<compile_context>
chip_gen: v6e
topology: v6e:2x2x1
jax: 0.10.0
libtpu: 0.0.40
codegen_flags: <defaults>
</compile_context>

<pallas_src>
import functools

import jax
import jax.numpy as jnp
from jax.experimental import pallas as pl
from jax.experimental.pallas import tpu as pltpu

LANE = 128                 # lane width: all feature dims padded to a multiple of this
TM = 512                   # A row tile (output rows)
TK = 1024                  # A reduction tile
XW_RESIDENT_BYTES = 12 * 1024 * 1024   # keep XW fully VMEM-resident if 2 copies fit here


def _round_up(x, m):
    return ((x + m - 1) // m) * m


def _pick_tiles(n_pad):
    """Pick (tm, tk) dividing n_pad, multiples of 128, v7x-friendly rows axis."""
    tk = min(TK, n_pad)
    while n_pad % tk:
        tk //= 2
    tm = min(TM, n_pad)
    while n_pad % tm:
        tm //= 2
    # v7x has 2 TensorCores; the 'parallel' rows axis needs >= 2 steps or one idles.
    if n_pad // tm < 2:
        tm = max(n_pad // 2, LANE)
    return tm, tk


# ---------------------------------------------------------------------------
# kernel 1: per-node feature transform  XW = X @ W   (bf16 x bf16, f32 acc)
# ---------------------------------------------------------------------------
def _linear_kernel(x_ref, w_ref, o_ref):
    o_ref[...] = jnp.dot(
        x_ref[...], w_ref[...], preferred_element_type=jnp.float32
    ).astype(o_ref.dtype)


def linear(x, w, *, tm, out_dtype=jnp.bfloat16):
    """X @ W, rows tiled.  x: [Np, f_in] bf16 (Np % tm == 0), w: [f_in, Fp] bf16."""
    n, f_in = x.shape
    f_out = w.shape[1]
    vmem = 2 * (tm * f_in + f_in * f_out + tm * f_out) * 2 + (4 << 20)
    return pl.pallas_call(
        _linear_kernel,
        out_shape=jax.ShapeDtypeStruct((n, f_out), out_dtype),
        grid_spec=pltpu.PrefetchScalarGridSpec(
            num_scalar_prefetch=0,
            grid=(n // tm,),
            in_specs=[
                pl.BlockSpec((tm, f_in), lambda i: (i, 0)),
                pl.BlockSpec((f_in, f_out), lambda i: (0, 0)),   # W resident (index constant)
            ],
            out_specs=pl.BlockSpec((tm, f_out), lambda i: (i, 0)),
        ),
        compiler_params=pltpu.CompilerParams(
            dimension_semantics=("parallel",),
            vmem_limit_bytes=int(min(max(vmem, 8 << 20), 64 << 20)),
        ),
    )(x, w)


# ---------------------------------------------------------------------------
# kernel 2: tiled aggregation  act((A_counts @ XW) * inv_deg + b)
# ---------------------------------------------------------------------------
def _aggregate_kernel(a_ref, xw_ref, inv_deg_ref, b_ref, o_ref, acc_ref, *,
                      act, tk, xw_resident):
    k = pl.program_id(1)

    @pl.when(k == 0)
    def _():
        # NOTE: cannot seed the accumulator with the bias because the epilogue
        # rescales by the f32 per-row 1/deg (A carries exact edge counts).
        acc_ref[...] = jnp.zeros_like(acc_ref)

    if xw_resident:
        # XW lives whole in VMEM for the entire grid; slice the k-th panel.
        xw = xw_ref[pl.ds(pl.multiple_of(k * tk, 128), tk), :]
    else:
        xw = xw_ref[...]
    # pure MXU accumulate: bf16 inputs, f32 accumulation
    acc_ref[...] += jnp.dot(a_ref[...], xw, preferred_element_type=jnp.float32)

    @pl.when(k == pl.num_programs(1) - 1)
    def _():
        # epilogue only: f32 mean-normalization, bias, activation, lane-dense store
        y = acc_ref[...] * inv_deg_ref[...] + b_ref[...]
        if act == "relu":
            y = jnp.maximum(y, 0.0)
        elif act == "tanh":
            y = jnp.tanh(y)
        o_ref[...] = y.astype(o_ref.dtype)


def aggregate(a, xw, inv_deg, b, act, *, tm, tk, out_dtype):
    """act((A @ XW) * inv_deg + b).

    a: [Np, Np] bf16 edge counts, xw: [Np, Fp] bf16, inv_deg: [Np, 1] f32,
    b: [1, Fp] f32.  Np % tm == 0, Np % tk == 0, Fp % 128 == 0 (padded by caller)."""
    n = a.shape[0]
    f_out = xw.shape[1]
    out_itemsize = jnp.dtype(out_dtype).itemsize

    # Keep XW VMEM-resident (fetched once) when it fits; otherwise stream per k.
    xw_resident = 2 * n * f_out * xw.dtype.itemsize <= XW_RESIDENT_BYTES
    if xw_resident:
        xw_spec = pl.BlockSpec((n, f_out), lambda i, k: (0, 0))
    else:
        # TODO(synk): fuse X @ W into this kernel for graphs where XW > VMEM.
        xw_spec = pl.BlockSpec((tk, f_out), lambda i, k: (k, 0))

    kernel = functools.partial(_aggregate_kernel, act=act, tk=tk,
                               xw_resident=xw_resident)

    xw_block_bytes = (n if xw_resident else tk) * f_out * xw.dtype.itemsize
    vmem = (2 * tm * tk * a.dtype.itemsize        # A double buffer
            + 2 * xw_block_bytes                  # XW (resident or streamed)
            + tm * f_out * 4                      # f32 accumulator scratch
            + 2 * tm * f_out * out_itemsize       # output double buffer
            + 2 * (tm + f_out) * 4                # inv_deg + bias
            + (4 << 20))                          # headroom
    flops = 2 * n * n * f_out
    transcendentals = n * f_out if act == "tanh" else 0
    bytes_accessed = int(n * n * a.dtype.itemsize
                         + (1 if xw_resident else n // tm) * n * f_out * xw.dtype.itemsize
                         + n * f_out * out_itemsize + n * 4 + f_out * 4)

    return pl.pallas_call(
        kernel,
        out_shape=jax.ShapeDtypeStruct((n, f_out), out_dtype),
        grid_spec=pltpu.PrefetchScalarGridSpec(
            num_scalar_prefetch=0,
            grid=(n // tm, n // tk),               # rows parallel, reduction last
            in_specs=[
                # A tile; on v5e bump to pipeline_mode=pl.Buffered(3) if DMA is exposed.
                pl.BlockSpec((tm, tk), lambda i, k: (i, k)),
                xw_spec,                                        # XW panel / full array
                pl.BlockSpec((tm, 1), lambda i, k: (i, 0)),     # f32 1/deg per row
                pl.BlockSpec((1, f_out), lambda i, k: (0, 0)),  # bias
            ],
            out_specs=pl.BlockSpec((tm, f_out), lambda i, k: (i, 0)),
            scratch_shapes=[pltpu.VMEM((tm, f_out), jnp.float32)],
        ),
        compiler_params=pltpu.CompilerParams(
            dimension_semantics=("parallel", "arbitrary"),
            # budget computed per call; capped at 64 MiB so it is v7x-safe
            vmem_limit_bytes=int(min(max(vmem, 16 << 20), 64 << 20)),
        ),
        cost_estimate=pl.CostEstimate(
            flops=flops, transcendentals=transcendentals, bytes_accessed=bytes_accessed,
        ),
    )(a, xw, inv_deg, b)


# ---------------------------------------------------------------------------
# graph / params glue
# ---------------------------------------------------------------------------
def build_adjacency(edge_index, num_nodes):
    """Dense adjacency matching old SAGEConv (concat=False) mean aggregation.

    Returns (counts bf16 [N, N], inv_deg f32 [N, 1]).  Existing self loops are
    removed, one self loop per node is added, parallel-edge multiplicity kept.
    Counts are small integers (exact in bf16 up to 256); the 1/deg row
    normalization is applied in f32 inside the kernel epilogue."""
    src, dst = edge_index[0], edge_index[1]
    not_self = (src != dst).astype(jnp.float32)
    a = jnp.zeros((num_nodes, num_nodes), jnp.float32)
    a = a.at[dst, src].add(not_self)           # duplicate edges keep multiplicity
    idx = jnp.arange(num_nodes)
    a = a.at[idx, idx].add(1.0)                # exactly one self loop per node
    deg = jnp.sum(a, axis=1, keepdims=True)    # >= 1 (self loop)
    return a.astype(jnp.bfloat16), (1.0 / deg).astype(jnp.float32)


def init_params(key, num_features, num_hidden, n_classes, num_hidden_layers):
    """Glorot-uniform init for every SAGEConv (W: [in, out], b: [out])."""
    def glorot(k, fan_in, fan_out):
        limit = jnp.sqrt(6.0 / (fan_in + fan_out))
        return jax.random.uniform(k, (fan_in, fan_out), jnp.float32, -limit, limit)

    keys = jax.random.split(key, 2 + num_hidden_layers)
    params = {
        "w_in": glorot(keys[0], num_features, num_hidden),
        "b_in": jnp.zeros((num_hidden,), jnp.float32),
        "w_hidden": [],
        "b_hidden": [],
        "w_out": glorot(keys[-1], num_hidden, n_classes),
        "b_out": jnp.zeros((n_classes,), jnp.float32),
    }
    for i in range(num_hidden_layers):
        params["w_hidden"].append(glorot(keys[1 + i], num_hidden, num_hidden))
        params["b_hidden"].append(jnp.zeros((num_hidden,), jnp.float32))
    return params


def prepare_params(params):
    """Pad + cast all weights/biases ONCE (outside the forward path):
    bf16 W with 128-multiple in/out dims, f32 bias rows [1, Fp]."""
    def prep(w, b):
        f_in, f_out = w.shape
        f_in_p, f_out_p = _round_up(f_in, LANE), _round_up(f_out, LANE)
        w_p = jnp.pad(w, ((0, f_in_p - f_in), (0, f_out_p - f_out))).astype(jnp.bfloat16)
        b_p = jnp.pad(b, (0, f_out_p - f_out)).astype(jnp.float32).reshape(1, f_out_p)
        return w_p, b_p

    weights, biases = [], []
    for w, b in ([(params["w_in"], params["b_in"])]
                 + list(zip(params["w_hidden"], params["b_hidden"]))
                 + [(params["w_out"], params["b_out"])]):
        w_p, b_p = prep(w, b)
        weights.append(w_p)
        biases.append(b_p)
    return tuple(weights), tuple(biases)


def psage_forward(weights, biases, x, a_counts, inv_deg, *, n_classes,
                  activation="relu"):
    """PSAGE forward (eval mode).

    x: [N, F] f32 features, a_counts: [N, N] bf16 edge counts,
    inv_deg: [N, 1] f32.  weights/biases are pre-padded (prepare_params)."""
    # TODO(synk): dropout is identity (eval mode); training-mode RNG dropout omitted.
    n = x.shape[0]
    n_pad = _round_up(n, 2 * LANE)
    tm, tk = _pick_tiles(n_pad)

    # Zero-pad graph once.  Padded rows/cols of A are zero and inv_deg is zero
    # there, so padded nodes never influence valid outputs (sliced off at the
    # end).  NOTE: padded rows of h become act(bias) after each layer — harmless
    # under this padding scheme; do not read padded rows elsewhere.
    a_p = jnp.pad(a_counts, ((0, n_pad - n), (0, n_pad - n)))
    inv_p = jnp.pad(inv_deg, ((0, n_pad - n), (0, 0)))
    f_in0 = weights[0].shape[0]
    h = jnp.pad(x, ((0, n_pad - n), (0, f_in0 - x.shape[1]))).astype(jnp.bfloat16)

    n_layers = len(weights)
    for li in range(n_layers):
        last = li == n_layers - 1
        act = "tanh" if last else activation
        # reassociated:  A @ (h @ W)  — cheap lane-dense bf16 feature matmul
        # first, then the HBM-bound aggregation with XW kept VMEM-resident.
        xw = linear(h, weights[li], tm=tm)
        h = aggregate(a_p, xw, inv_p, biases[li], act, tm=tm, tk=tk,
                      out_dtype=jnp.float32 if last else jnp.bfloat16)
    return h[:n, :n_classes]


def psage_reference(params, x, a_norm_f32, activation="relu"):
    """Pure-JAX f32 reference (same dense-A formulation) for a sanity check."""
    act = (lambda v: jnp.maximum(v, 0.0)) if activation == "relu" else jnp.tanh
    h = act(a_norm_f32 @ x @ params["w_in"] + params["b_in"])
    for w, b in zip(params["w_hidden"], params["b_hidden"]):
        h = act(a_norm_f32 @ h @ w + b)
    return jnp.tanh(a_norm_f32 @ h @ params["w_out"] + params["b_out"])


if __name__ == "__main__":
    key = jax.random.PRNGKey(0)
    k_x, k_src, k_dst, k_p = jax.random.split(key, 4)

    # small synthetic graph consistent with PSAGE(num_features=4, n_classes=3,
    # num_hidden=32, num_hidden_layers=2, dropout=0.5, activation=relu)
    N, F, H, C, L = 16, 4, 32, 3, 2
    num_edges = 40

    x = jax.random.normal(k_x, (N, F), dtype=jnp.float32)
    src = jax.random.randint(k_src, (num_edges,), 0, N)
    dst = jax.random.randint(k_dst, (num_edges,), 0, N)
    edge_index = jnp.stack([src, dst], axis=0)   # [2, E], row0 = source, row1 = target

    a_counts, inv_deg = build_adjacency(edge_index, N)
    params = init_params(k_p, F, H, C, L)
    weights, biases = prepare_params(params)     # pad/cast once, outside forward

    fwd = jax.jit(functools.partial(psage_forward, n_classes=C, activation="relu"))
    out = fwd(weights, biases, x, a_counts, inv_deg)
    jax.block_until_ready(out)
    assert out.shape == (N, C)

    a_norm = a_counts.astype(jnp.float32) * inv_deg
    ref = psage_reference(params, x, a_norm, activation="relu")
    assert jnp.allclose(out, ref, atol=5e-2, rtol=5e-2), float(jnp.max(jnp.abs(out - ref)))

    print("KERNEL_OK")
</pallas_src>

<mosaic_0001>
module attributes {stable_mosaic.version = 11 : i64} {
  func.func @_aggregate_kernel(%arg0: i32, %arg1: i32, %arg2: memref<128x256xbf16, #tpu.memory_space<vmem>>, %arg3: memref<256x128xbf16, #tpu.memory_space<vmem>>, %arg4: memref<128x1xf32, #tpu.memory_space<vmem>>, %arg5: memref<1x128xf32, #tpu.memory_space<vmem>>, %arg6: memref<128x128xbf16, #tpu.memory_space<vmem>>, %arg7: memref<128x128xf32, #tpu.memory_space<vmem>>) attributes {dimension_semantics = [#tpu.dimension_semantics<parallel>, #tpu.dimension_semantics<arbitrary>], iteration_bounds = array<i64: 2, 1>, scalar_prefetch = 0 : i64, scratch_operands = 1 : i64, tpu.core_type = #tpu.core_type<tc>, window_params = [{transform_indices = @transform_0, window_bounds = array<i64: 128, 256>}, {pipeline_mode = #tpu.pipeline_mode<synchronous>, transform_indices = @transform_1, window_bounds = array<i64: 256, 128>}, {transform_indices = @transform_2, window_bounds = array<i64: 128, 1>}, {pipeline_mode = #tpu.pipeline_mode<synchronous>, transform_indices = @transform_3, window_bounds = array<i64: 1, 128>}, {transform_indices = @transform_4, window_bounds = array<i64: 128, 128>}]} {
    %c0_i32 = arith.constant 0 : i32
    %0 = arith.cmpi eq, %arg1, %c0_i32 : i32
    %1 = arith.extui %0 : i1 to i32
    %c0_i32_0 = arith.constant 0 : i32
    %2 = arith.cmpi ne, %1, %c0_i32_0 : i32
    scf.if %2 {
      %cst_9 = arith.constant 0.000000e+00 : f32
      %15 = vector.broadcast %cst_9 : f32 to vector<128x128xf32>
      %c0_10 = arith.constant 0 : index
      %c0_11 = arith.constant 0 : index
      %16 = vector.load %arg7[%c0_10, %c0_11] : memref<128x128xf32, #tpu.memory_space<vmem>>, vector<128x128xf32>
      tpu.vector_store %arg7[%c0_10, %c0_11], %15 {strides = array<i32>} : memref<128x128xf32, #tpu.memory_space<vmem>>, vector<128x128xf32>,
    } else {
    }
    %c256_i32 = arith.constant 256 : i32
    %3 = arith.muli %arg1, %c256_i32 : i32
    %4 = tpu.assume_multiple %3, 128 : i32
    %5 = arith.index_cast %4 : i32 to index
    %c0 = arith.constant 0 : index
    %6 = vector.load %arg3[%5, %c0] : memref<256x128xbf16, #tpu.memory_space<vmem>>, vector<256x128xbf16>
    %c0_1 = arith.constant 0 : index
    %c0_2 = arith.constant 0 : index
    %7 = vector.load %arg7[%c0_1, %c0_2] : memref<128x128xf32, #tpu.memory_space<vmem>>, vector<128x128xf32>
    %c0_3 = arith.constant 0 : index
    %c0_4 = arith.constant 0 : index
    %8 = vector.load %arg2[%c0_3, %c0_4] : memref<128x256xbf16, #tpu.memory_space<vmem>>, vector<128x256xbf16>
    %cst = arith.constant dense<0.000000e+00> : vector<128x128xf32>
    %9 = tpu.matmul %8, %6, %cst {dimension_numbers = #tpu.dot_dimension_numbers<[1], [0], [0], [1], [0, 0, 1, 1], [], []>} : vector<128x256xbf16>, vector<256x128xbf16>, vector<128x128xf32> -> vector<128x128xf32>
    %10 = arith.addf %7, %9 : vector<128x128xf32>
    %c0_5 = arith.constant 0 : index
    %c0_6 = arith.constant 0 : index
    %11 = vector.load %arg7[%c0_5, %c0_6] : memref<128x128xf32, #tpu.memory_space<vmem>>, vector<128x128xf32>
    tpu.vector_store %arg7[%c0_5, %c0_6], %10 {strides = array<i32>} : memref<128x128xf32, #tpu.memory_space<vmem>>, vector<128x128xf32>,
    %c0_i32_7 = arith.constant 0 : i32
    %12 = arith.cmpi eq, %arg1, %c0_i32_7 : i32
    %13 = arith.extui %12 : i1 to i32
    %c0_i32_8 = arith.constant 0 : i32
    %14 = arith.cmpi ne, %13, %c0_i32_8 : i32
    scf.if %14 {
      %c0_9 = arith.constant 0 : index
      %c0_10 = arith.constant 0 : index
      %15 = vector.load %arg7[%c0_9, %c0_10] : memref<128x128xf32, #tpu.memory_space<vmem>>, vector<128x128xf32>
      %c0_11 = arith.constant 0 : index
      %c0_12 = arith.constant 0 : index
      %16 = vector.load %arg4[%c0_11, %c0_12] : memref<128x1xf32, #tpu.memory_space<vmem>>, vector<128x1xf32>
      %17 = vector.broadcast %16 : vector<128x1xf32> to vector<128x128xf32>
      %18 = arith.mulf %15, %17 : vector<128x128xf32>
      %c0_13 = arith.constant 0 : index
      %c0_14 = arith.constant 0 : index
      %19 = vector.load %arg5[%c0_13, %c0_14] : memref<1x128xf32, #tpu.memory_space<vmem>>, vector<1x128xf32>
      %20 = vector.broadcast %19 : vector<1x128xf32> to vector<128x128xf32>
      %21 = arith.addf %18, %20 : vector<128x128xf32>
      %cst_15 = arith.constant 0.000000e+00 : f32
      %22 = vector.broadcast %cst_15 : f32 to vector<128x128xf32>
      %23 = arith.maximumf %21, %22 : vector<128x128xf32>
      %24 = arith.truncf %23 : vector<128x128xf32> to vector<128x128xbf16>
      %c0_16 = arith.constant 0 : index
      %c0_17 = arith.constant 0 : index
      %25 = vector.load %arg6[%c0_16, %c0_17] : memref<128x128xbf16, #tpu.memory_space<vmem>>, vector<128x128xbf16>
      tpu.vector_store %arg6[%c0_16, %c0_17], %24 {strides = array<i32>} : memref<128x128xbf16, #tpu.memory_space<vmem>>, vector<128x128xbf16>,
    } else {
    }
    return
  }
  func.func @transform_0(%arg0: i32, %arg1: i32) -> (i32, i32) {
    %c0_i32 = arith.constant 0 : i32
    return %arg0, %arg1 : i32, i32
  }
  func.func @transform_1(%arg0: i32, %arg1: i32) -> (i32, i32) {
    %c0_i32 = arith.constant 0 : i32
    %c0_i32_0 = arith.constant 0 : i32
    %c0_i32_1 = arith.constant 0 : i32
    return %c0_i32, %c0_i32_0 : i32, i32
  }
  func.func @transform_2(%arg0: i32, %arg1: i32) -> (i32, i32) {
    %c0_i32 = arith.constant 0 : i32
    %c0_i32_0 = arith.constant 0 : i32
    return %arg0, %c0_i32 : i32, i32
  }
  func.func @transform_3(%arg0: i32, %arg1: i32) -> (i32, i32) {
    %c0_i32 = arith.constant 0 : i32
    %c0_i32_0 = arith.constant 0 : i32
    %c0_i32_1 = arith.constant 0 : i32
    return %c0_i32, %c0_i32_0 : i32, i32
  }
  func.func @transform_4(%arg0: i32, %arg1: i32) -> (i32, i32) {
    %c0_i32 = arith.constant 0 : i32
    %c0_i32_0 = arith.constant 0 : i32
    return %arg0, %c0_i32 : i32, i32
  }
}

module attributes {stable_mosaic.version = 11 : i64} {
  func.func @_linear_kernel(%arg0: i32, %arg1: memref<128x128xbf16, #tpu.memory_space<vmem>>, %arg2: memref<128x128xbf16, #tpu.memory_space<vmem>>, %arg3: memref<128x128xbf16, #tpu.memory_space<vmem>>) attributes {dimension_semantics = [#tpu.dimension_semantics<parallel>], iteration_bounds = array<i64: 2>, scalar_prefetch = 0 : i64, scratch_operands = 0 : i64, tpu.core_type = #tpu.core_type<tc>, window_params = [{transform_indices = @transform_0, window_bounds = array<i64: 128, 128>}, {pipeline_mode = #tpu.pipeline_mode<synchronous>, transform_indices = @transform_1, window_bounds = array<i64: 128, 128>}, {transform_indices = @transform_2, window_bounds = array<i64: 128, 128>}]} {
    %c0 = arith.constant 0 : index
    %c0_0 = arith.constant 0 : index
    %0 = vector.load %arg1[%c0, %c0_0] : memref<128x128xbf16, #tpu.memory_space<vmem>>, vector<128x128xbf16>
    %c0_1 = arith.constant 0 : index
    %c0_2 = arith.constant 0 : index
    %1 = vector.load %arg2[%c0_1, %c0_2] : memref<128x128xbf16, #tpu.memory_space<vmem>>, vector<128x128xbf16>
    %cst = arith.constant dense<0.000000e+00> : vector<128x128xf32>
    %2 = tpu.matmul %0, %1, %cst {dimension_numbers = #tpu.dot_dimension_numbers<[1], [0], [0], [1], [0, 0, 1, 1], [], []>} : vector<128x128xbf16>, vector<128x128xbf16>, vector<128x128xf32> -> vector<128x128xf32>
    %3 = arith.truncf %2 : vector<128x128xf32> to vector<128x128xbf16>
    %c0_3 = arith.constant 0 : index
    %c0_4 = arith.constant 0 : index
    %4 = vector.load %arg3[%c0_3, %c0_4] : memref<128x128xbf16, #tpu.memory_space<vmem>>, vector<128x128xbf16>
    tpu.vector_store %arg3[%c0_3, %c0_4], %3 {strides = array<i32>} : memref<128x128xbf16, #tpu.memory_space<vmem>>, vector<128x128xbf16>,
    return
  }
  func.func @transform_0(%arg0: i32) -> (i32, i32) {
    %c0_i32 = arith.constant 0 : i32
    %c0_i32_0 = arith.constant 0 : i32
    return %arg0, %c0_i32 : i32, i32
  }
  func.func @transform_1(%arg0: i32) -> (i32, i32) {
    %c0_i32 = arith.constant 0 : i32
    %c0_i32_0 = arith.constant 0 : i32
    %c0_i32_1 = arith.constant 0 : i32
    return %c0_i32, %c0_i32_0 : i32, i32
  }
  func.func @transform_2(%arg0: i32) -> (i32, i32) {
    %c0_i32 = arith.constant 0 : i32
    %c0_i32_0 = arith.constant 0 : i32
    return %arg0, %c0_i32 : i32, i32
  }
}

module attributes {stable_mosaic.version = 11 : i64} {
  func.func @_aggregate_kernel(%arg0: i32, %arg1: i32, %arg2: memref<128x256xbf16, #tpu.memory_space<vmem>>, %arg3: memref<256x128xbf16, #tpu.memory_space<vmem>>, %arg4: memref<128x1xf32, #tpu.memory_space<vmem>>, %arg5: memref<1x128xf32, #tpu.memory_space<vmem>>, %arg6: memref<128x128xf32, #tpu.memory_space<vmem>>, %arg7: memref<128x128xf32, #tpu.memory_space<vmem>>) attributes {dimension_semantics = [#tpu.dimension_semantics<parallel>, #tpu.dimension_semantics<arbitrary>], iteration_bounds = array<i64: 2, 1>, scalar_prefetch = 0 : i64, scratch_operands = 1 : i64, tpu.core_type = #tpu.core_type<tc>, window_params = [{transform_indices = @transform_0, window_bounds = array<i64: 128, 256>}, {pipeline_mode = #tpu.pipeline_mode<synchronous>, transform_indices = @transform_1, window_bounds = array<i64: 256, 128>}, {transform_indices = @transform_2, window_bounds = array<i64: 128, 1>}, {pipeline_mode = #tpu.pipeline_mode<synchronous>, transform_indices = @transform_3, window_bounds = array<i64: 1, 128>}, {transform_indices = @transform_4, window_bounds = array<i64: 128, 128>}]} {
    %c0_i32 = arith.constant 0 : i32
    %0 = arith.cmpi eq, %arg1, %c0_i32 : i32
    %1 = arith.extui %0 : i1 to i32
    %c0_i32_0 = arith.constant 0 : i32
    %2 = arith.cmpi ne, %1, %c0_i32_0 : i32
    scf.if %2 {
      %cst_9 = arith.constant 0.000000e+00 : f32
      %15 = vector.broadcast %cst_9 : f32 to vector<128x128xf32>
      %c0_10 = arith.constant 0 : index
      %c0_11 = arith.constant 0 : index
      %16 = vector.load %arg7[%c0_10, %c0_11] : memref<128x128xf32, #tpu.memory_space<vmem>>, vector<128x128xf32>
      tpu.vector_store %arg7[%c0_10, %c0_11], %15 {strides = array<i32>} : memref<128x128xf32, #tpu.memory_space<vmem>>, vector<128x128xf32>,
    } else {
    }
    %c256_i32 = arith.constant 256 : i32
    %3 = arith.muli %arg1, %c256_i32 : i32
    %4 = tpu.assume_multiple %3, 128 : i32
    %5 = arith.index_cast %4 : i32 to index
    %c0 = arith.constant 0 : index
    %6 = vector.load %arg3[%5, %c0] : memref<256x128xbf16, #tpu.memory_space<vmem>>, vector<256x128xbf16>
    %c0_1 = arith.constant 0 : index
    %c0_2 = arith.constant 0 : index
    %7 = vector.load %arg7[%c0_1, %c0_2] : memref<128x128xf32, #tpu.memory_space<vmem>>, vector<128x128xf32>
    %c0_3 = arith.constant 0 : index
    %c0_4 = arith.constant 0 : index
    %8 = vector.load %arg2[%c0_3, %c0_4] : memref<128x256xbf16, #tpu.memory_space<vmem>>, vector<128x256xbf16>
    %cst = arith.constant dense<0.000000e+00> : vector<128x128xf32>
    %9 = tpu.matmul %8, %6, %cst {dimension_numbers = #tpu.dot_dimension_numbers<[1], [0], [0], [1], [0, 0, 1, 1], [], []>} : vector<128x256xbf16>, vector<256x128xbf16>, vector<128x128xf32> -> vector<128x128xf32>
    %10 = arith.addf %7, %9 : vector<128x128xf32>
    %c0_5 = arith.constant 0 : index
    %c0_6 = arith.constant 0 : index
    %11 = vector.load %arg7[%c0_5, %c0_6] : memref<128x128xf32, #tpu.memory_space<vmem>>, vector<128x128xf32>
    tpu.vector_store %arg7[%c0_5, %c0_6], %10 {strides = array<i32>} : memref<128x128xf32, #tpu.memory_space<vmem>>, vector<128x128xf32>,
    %c0_i32_7 = arith.constant 0 : i32
    %12 = arith.cmpi eq, %arg1, %c0_i32_7 : i32
    %13 = arith.extui %12 : i1 to i32
    %c0_i32_8 = arith.constant 0 : i32
    %14 = arith.cmpi ne, %13, %c0_i32_8 : i32
    scf.if %14 {
      %c0_9 = arith.constant 0 : index
      %c0_10 = arith.constant 0 : index
      %15 = vector.load %arg7[%c0_9, %c0_10] : memref<128x128xf32, #tpu.memory_space<vmem>>, vector<128x128xf32>
      %c0_11 = arith.constant 0 : index
      %c0_12 = arith.constant 0 : index
      %16 = vector.load %arg4[%c0_11, %c0_12] : memref<128x1xf32, #tpu.memory_space<vmem>>, vector<128x1xf32>
      %17 = vector.broadcast %16 : vector<128x1xf32> to vector<128x128xf32>
      %18 = arith.mulf %15, %17 : vector<128x128xf32>
      %c0_13 = arith.constant 0 : index
      %c0_14 = arith.constant 0 : index
      %19 = vector.load %arg5[%c0_13, %c0_14] : memref<1x128xf32, #tpu.memory_space<vmem>>, vector<1x128xf32>
      %20 = vector.broadcast %19 : vector<1x128xf32> to vector<128x128xf32>
      %21 = arith.addf %18, %20 : vector<128x128xf32>
      %22 = math.tanh %21 : vector<128x128xf32>
      %c0_15 = arith.constant 0 : index
      %c0_16 = arith.constant 0 : index
      %23 = vector.load %arg6[%c0_15, %c0_16] : memref<128x128xf32, #tpu.memory_space<vmem>>, vector<128x128xf32>
      tpu.vector_store %arg6[%c0_15, %c0_16], %22 {strides = array<i32>} : memref<128x128xf32, #tpu.memory_space<vmem>>, vector<128x128xf32>,
    } else {
    }
    return
  }
  func.func @transform_0(%arg0: i32, %arg1: i32) -> (i32, i32) {
    %c0_i32 = arith.constant 0 : i32
    return %arg0, %arg1 : i32, i32
  }
  func.func @transform_1(%arg0: i32, %arg1: i32) -> (i32, i32) {
    %c0_i32 = arith.constant 0 : i32
    %c0_i32_0 = arith.constant 0 : i32
    %c0_i32_1 = arith.constant 0 : i32
    return %c0_i32, %c0_i32_0 : i32, i32
  }
  func.func @transform_2(%arg0: i32, %arg1: i32) -> (i32, i32) {
    %c0_i32 = arith.constant 0 : i32
    %c0_i32_0 = arith.constant 0 : i32
    return %arg0, %c0_i32 : i32, i32
  }
  func.func @transform_3(%arg0: i32, %arg1: i32) -> (i32, i32) {
    %c0_i32 = arith.constant 0 : i32
    %c0_i32_0 = arith.constant 0 : i32
    %c0_i32_1 = arith.constant 0 : i32
    return %c0_i32, %c0_i32_0 : i32, i32
  }
  func.func @transform_4(%arg0: i32, %arg1: i32) -> (i32, i32) {
    %c0_i32 = arith.constant 0 : i32
    %c0_i32_0 = arith.constant 0 : i32
    return %arg0, %c0_i32 : i32, i32
  }
}

</mosaic_0001>

<llo_original>
// kernel: psage_forward.8
$region0: #{psage_forward.8}
  #allocation0 [shape = 'u32[]', space=smem, size = 0x4, offset = 0x4, fixed_abs, tag = 'smem constant byte address 0x4 - core index']
  #allocation1 [shape = 'u32[144,128]{1,0:T(1,128)}', space=vmem, size = 0x12000, scoped, tag = 'internal scratch']
  %s0 = inlined_call_operand.vmem [shape: bf16[256,128], index: 0, kind: input, shape index: {}]
  %s1 = inlined_call_operand.vmem [shape: bf16[128,128], index: 1, kind: input, shape index: {}]
  %s2 = inlined_call_operand.vmem [shape: bf16[256,128], index: 2, kind: output, shape index: {}]
  %s3 = sld [smem:[#allocation0]]
  $region41: #{psage_forward.8} parent=0
    _
  %s5 = ssub.s32 1, %s3
  %s6 = scalar_select 0, %s5, %s3
  loop: start=0, step=1, limit=4
  $region2: #{psage_forward.8} parent=0 // loop_pre_header
    _
  $region3: #{psage_forward.8} parent=0 // loop_header
    %s8 = sphi 0, %s12
    %p9 = scmp.ge.s32.totalorder %s8, 4
    %s18 = sphi 0, %s20
    %s21 = sphi 0, %s18
    %s22 = sphi 0, %s21
    %s38 = sphi 0, %s22
    %s42 = sphi 0, %s42
    %s44 = sphi 0, %s42
    %s45 = sphi 0, %s44
    %s59 = sphi 0, %s45
    %s65 = sphi 0, %s67
    %s68 = sphi 0, %s65
    %s69 = sphi 0, %s68
    %s85 = sphi 0, %s69
  $region4: #{psage_forward.8} parent=0 // loop_header_branch
    %11 = sbr.rel (%p9) target = $region8
  $region5: #{psage_forward.8} parent=0 // loop_body
    %s13 = ssub.s32 %s8, 1
    %s14 = ssub.s32 %s8, 2
    %s15 = sadd.s32 %s8, 1
    %s16 = ssub.s32 %s8, %s15
    %p17 = scmp.eq.s32.totalorder %s16, 0
    %s19 = sadd.s32 %s18, 1
    %s20 = scalar_select %p17, %s18, %s19
    %p23 = pneg %p17
    %p24 = scmp.eq.s32.totalorder %s8, 1
    %p25 = por %p23, %p24
    %p26 = scmp.ne.s32.totalorder %s18, %s21
    %p27 = scmp.eq.s32.totalorder %s8, 0
    %p28 = por %p26, %p27
    %p29 = scmp.ne.s32.totalorder %s18, %s21
    %p30 = scmp.eq.s32.totalorder %s13, 1
    %p31 = por %p29, %p30
    %p32 = scmp.ne.s32.totalorder %s21, %s22
    %p33 = scmp.eq.s32.totalorder %s13, 0
    %p34 = por %p32, %p33
    %p35 = scmp.ne.s32.totalorder %s21, %s22
    %p36 = scmp.eq.s32.totalorder %s14, 1
    %p37 = por %p35, %p36
    %p39 = scmp.ne.s32.totalorder %s22, %s38
    %p40 = scmp.eq.s32.totalorder %s14, 0
    %p41 = por %p39, %p40
    %s43 = sadd.s32 %s42, 1
    %p46 = scmp.eq.s32.totalorder %s8, 1
    %p47 = scmp.ne.s32.totalorder %s42, %s44
    %p48 = scmp.eq.s32.totalorder %s8, 0
    %p49 = por %p47, %p48
    %p50 = scmp.ne.s32.totalorder %s42, %s44
    %p51 = scmp.eq.s32.totalorder %s13, 1
    %p52 = por %p50, %p51
    %p53 = scmp.ne.s32.totalorder %s44, %s45
    %p54 = scmp.eq.s32.totalorder %s13, 0
    %p55 = por %p53, %p54
    %p56 = scmp.ne.s32.totalorder %s44, %s45
    %p57 = scmp.eq.s32.totalorder %s14, 1
    %p58 = por %p56, %p57
    %p60 = scmp.ne.s32.totalorder %s45, %s59
    %p61 = scmp.eq.s32.totalorder %s14, 0
    %p62 = por %p60, %p61
    %s63 = ssub.s32 %s8, %s15
    %p64 = scmp.eq.s32.totalorder %s63, 0
    %s66 = sadd.s32 %s65, 1
    %s67 = scalar_select %p64, %s65, %s66
    %p70 = pneg %p64
    %p71 = scmp.eq.s32.totalorder %s8, 1
    %p72 = por %p70, %p71
    %p73 = scmp.ne.s32.totalorder %s65, %s68
    %p74 = scmp.eq.s32.totalorder %s8, 0
    %p75 = por %p73, %p74
    %p76 = scmp.ne.s32.totalorder %s65, %s68
    %p77 = scmp.eq.s32.totalorder %s13, 1
    %p78 = por %p76, %p77
    %p79 = scmp.ne.s32.totalorder %s68, %s69
    %p80 = scmp.eq.s32.totalorder %s13, 0
    %p81 = por %p79, %p80
    %p82 = scmp.ne.s32.totalorder %s68, %s69
    %p83 = scmp.eq.s32.totalorder %s14, 1
    %p84 = por %p82, %p83
    %p86 = scmp.ne.s32.totalorder %s69, %s85
    %p87 = scmp.eq.s32.totalorder %s14, 0
    %p88 = por %p86, %p87
    %p89 = scmp.le.s32.totalorder 1, %s8
    %p90 = scmp.lt.s32.totalorder %s8, 3
    %p91 = pnand %p89, %p90
    %p92 = pneg %p91
    // Predicated region
    $region9: #{psage_forward.8} parent=5 // pred_check
      _
    $region10: #{psage_forward.8} parent=5 // pred_check_branch
      %94 = sbr.rel (%p91) target = $region12
    $region11: #{psage_forward.8} parent=5 // pred_region
      %s95 = ssub.s32 %s8, 1
      // Predicated region
      $region13: #{psage_forward.8} parent=11 // pred_check
        %p96 = pneg %p55
      $region14: #{psage_forward.8} parent=11 // pred_check_branch
        %98 = sbr.rel (%p96) target = $region16
      $region15: #{psage_forward.8} parent=11 // pred_region
        _
      $region16: #{psage_forward.8} parent=11 // pred_fallthru
        _
    $region12: #{psage_forward.8} parent=5 // pred_fallthru
      _
    %p99 = scmp.lt.s32.totalorder %s8, 2
    // Predicated region
    $region17: #{psage_forward.8} parent=5 // pred_check
      %p100 = pneg %p99
    $region18: #{psage_forward.8} parent=5 // pred_check_branch
      %102 = sbr.rel (%p100) target = $region20
    $region19: #{psage_forward.8} parent=5 // pred_region
      // Predicated region
      $region21: #{psage_forward.8} parent=19 // pred_check
        %p103 = pneg %p28
      $region22: #{psage_forward.8} parent=19 // pred_check_branch
        %105 = sbr.rel (%p103) target = $region24
      $region23: #{psage_forward.8} parent=19 // pred_region
        %s106 = smul.u32 16, %s8
        %p107 = scmp.lt.s32.totalorder %s106, 31
        %s108 = scalar_select %p107, %s106, 31
        %s109 = smul.addr %s108, 4
        %s110 = scalar_lea.vmem %s0, %s109
        %s111 = smul.u32 16, %s8
      $region24: #{psage_forward.8} parent=19 // pred_fallthru
        _
    $region20: #{psage_forward.8} parent=5 // pred_fallthru
      _
    %p112 = scmp.le.s32.totalorder 1, %s8
    %p113 = scmp.lt.s32.totalorder %s8, 3
    %p114 = pnand %p112, %p113
    %p115 = pneg %p114
    // Predicated region
    $region25: #{psage_forward.8} parent=5 // pred_check
      _
    $region26: #{psage_forward.8} parent=5 // pred_check_branch
      %117 = sbr.rel (%p114) target = $region28
    $region27: #{psage_forward.8} parent=5 // pred_region
      %s118 = ssub.s32 %s8, 1
      %s119 = smul.u32 16, %s13
      %p120 = scmp.lt.s32.totalorder %s119, 31
      %s121 = scalar_select %p120, %s119, 31
      %s122 = smul.addr %s121, 4
      %s123 = scalar_lea.vmem %s0, %s122
      %p124 = pneg %p34
      %p125 = pneg %p31
      %p126 = pneg %p55
      %p127 = pneg %p52
      %p128 = pneg %p81
      %p129 = pneg %p78
      %s130 = smul.u32 16, %s13
      %p131 = scmp.lt.s32.totalorder %s130, 31
      %s132 = scalar_select %p131, %s130, 31
      %s133 = smul.addr %s132, 4
      %s134 = scalar_lea.vmem %s2, %s133
      %s135 = smul.u32 16, %s13
      %p136 = scmp.lt.s32.totalorder %s135, 31
      %s137 = scalar_select %p136, %s135, 31
      %s138 = smul.addr %s137, 4
      %s139 = scalar_lea.vmem %s0, %s138
      %s140 = smul.u32 16, %s13
      %s141 = smul.u32 16, %s13
      %p142 = scmp.lt.s32.totalorder %s141, 31
      %s143 = scalar_select %p142, %s141, 31
      %s144 = smul.addr %s143, 4
      %s145 = scalar_lea.vmem %s2, %s144
      %s146 = smul.u32 16, %s13
      %v148 = vld [vmem:[%s139] sm:$0xf]
      %v149 = vld [vmem:[%s139 + $0x4] sm:$0xf]
      %v150 = vld [vmem:[%s139 + $0x8] sm:$0xf]
      %v151 = vld [vmem:[%s139 + $0xc] sm:$0xf]
      %v152 = vld [vmem:[%s139 + $0x10] sm:$0xf]
      %v153 = vld [vmem:[%s139 + $0x14] sm:$0xf]
      %v154 = vld [vmem:[%s139 + $0x18] sm:$0xf]
      %v155 = vld [vmem:[%s139 + $0x1c] sm:$0xf]
      %v156 = vld [vmem:[%s139 + $0x20] sm:$0xf]
      %v157 = vld [vmem:[%s139 + $0x24] sm:$0xf]
      %v158 = vld [vmem:[%s139 + $0x28] sm:$0xf]
      %v159 = vld [vmem:[%s139 + $0x2c] sm:$0xf]
      %v160 = vld [vmem:[%s139 + $0x30] sm:$0xf]
      %v161 = vld [vmem:[%s139 + $0x34] sm:$0xf]
      %v162 = vld [vmem:[%s139 + $0x38] sm:$0xf]
      %v163 = vld [vmem:[%s139 + $0x3c] sm:$0xf]
      %v164 = vld [vmem:[%s1] sm:$0xf]
      %v165 = vld [vmem:[%s1 + $0x4] sm:$0xf]
      %v166 = vld [vmem:[%s1 + $0x8] sm:$0xf]
      %v167 = vld [vmem:[%s1 + $0xc] sm:$0xf]
      %v168 = vld [vmem:[%s1 + $0x10] sm:$0xf]
      %v169 = vld [vmem:[%s1 + $0x14] sm:$0xf]
      %v170 = vld [vmem:[%s1 + $0x18] sm:$0xf]
      %v171 = vld [vmem:[%s1 + $0x1c] sm:$0xf]
      %v172 = vld [vmem:[%s1 + $0x20] sm:$0xf]
      %v173 = vld [vmem:[%s1 + $0x24] sm:$0xf]
      %v174 = vld [vmem:[%s1 + $0x28] sm:$0xf]
      %v175 = vld [vmem:[%s1 + $0x2c] sm:$0xf]
      %v176 = vld [vmem:[%s1 + $0x30] sm:$0xf]
      %v177 = vld [vmem:[%s1 + $0x34] sm:$0xf]
      %v178 = vld [vmem:[%s1 + $0x38] sm:$0xf]
      %v179 = vld [vmem:[%s1 + $0x3c] sm:$0xf]
      %v196 = vunpack.c.l.b16 %v148
      %v197 = vunpack.c.l.b16 %v149
      %v198 = vunpack.c.l.b16 %v150
      %v199 = vunpack.c.l.b16 %v151
      %v200 = vunpack.c.l.b16 %v152
      %v201 = vunpack.c.l.b16 %v153
      %v202 = vunpack.c.l.b16 %v154
      %v203 = vunpack.c.l.b16 %v155
      %v204 = vunpack.c.l.b16 %v156
      %v205 = vunpack.c.l.b16 %v157
      %v206 = vunpack.c.l.b16 %v158
      %v207 = vunpack.c.l.b16 %v159
      %v208 = vunpack.c.l.b16 %v160
      %v209 = vunpack.c.l.b16 %v161
      %v210 = vunpack.c.l.b16 %v162
      %v211 = vunpack.c.l.b16 %v163
      %v212 = vpack.c.b16 %v197, %v196
      %v213 = vpack.c.b16 %v199, %v198
      %v214 = vpack.c.b16 %v201, %v200
      %v215 = vpack.c.b16 %v203, %v202
      %v216 = vpack.c.b16 %v205, %v204
      %v217 = vpack.c.b16 %v207, %v206
      %v218 = vpack.c.b16 %v209, %v208
      %v219 = vpack.c.b16 %v211, %v210
      %v244 = vunpack.c.l.b16 %v164
      %v245 = vunpack.c.l.b16 %v165
      %v246 = vunpack.c.l.b16 %v166
      %v247 = vunpack.c.l.b16 %v167
      %v248 = vunpack.c.l.b16 %v168
      %v249 = vunpack.c.l.b16 %v169
      %v250 = vunpack.c.l.b16 %v170
      %v251 = vunpack.c.l.b16 %v171
      %v252 = vunpack.c.l.b16 %v172
      %v253 = vunpack.c.l.b16 %v173
      %v254 = vunpack.c.l.b16 %v174
      %v255 = vunpack.c.l.b16 %v175
      %v256 = vunpack.c.l.b16 %v176
      %v257 = vunpack.c.l.b16 %v177
      %v258 = vunpack.c.l.b16 %v178
      %v259 = vunpack.c.l.b16 %v179
      %v260 = vpack.c.b16 %v245, %v244
      %v261 = vpack.c.b16 %v247, %v246
      %v262 = vpack.c.b16 %v249, %v248
      %v263 = vpack.c.b16 %v251, %v250
      %v264 = vpack.c.b16 %v253, %v252
      %v265 = vpack.c.b16 %v255, %v254
      %v266 = vpack.c.b16 %v257, %v256
      %v267 = vpack.c.b16 %v259, %v258
      %276 = vmatprep.subr.bf16.mxu0 0
      %277 = vmatpush1.bf16.msra.mxu0 %v267
      %278 = vmatprep.subr.bf16.mxu0 0
      %279 = vmatpush1.bf16.msra.mxu0 %v266
      %280 = vmatprep.subr.bf16.mxu0 0
      %281 = vmatpush1.bf16.msra.mxu0 %v265
      %282 = vmatprep.subr.bf16.mxu0 0
      %283 = vmatpush1.bf16.msra.mxu0 %v264
      %284 = vmatprep.subr.bf16.mxu0 0
      %285 = vmatpush1.bf16.msra.mxu0 %v263
      %286 = vmatprep.subr.bf16.mxu0 0
      %287 = vmatpush1.bf16.msra.mxu0 %v262
      %288 = vmatprep.subr.bf16.mxu0 0
      %289 = vmatpush1.bf16.msra.mxu0 %v261
      %290 = vmatprep.subr.bf16.mxu0 0
      %291 = vmatpush1.bf16.msra.mxu0 %v260
      %292 = vmatprep.subr.bf16.mxu0 0
      %293 = vmatpush2.bf16.msra.mxu0 0
      %294 = vmatprep.subr.bf16.mxu0 0
      %295 = vmatpush2.bf16.msra.mxu0 0
      %296 = vmatprep.subr.bf16.mxu0 0
      %297 = vmatpush2.bf16.msra.mxu0 0
      %298 = vmatprep.subr.bf16.mxu0 0
      %299 = vmatpush2.bf16.msra.mxu0 0
      %300 = vmatprep.subr.bf16.mxu0 0
      %301 = vmatpush2.bf16.msra.mxu0 0
      %302 = vmatprep.subr.bf16.mxu0 0
      %303 = vmatpush2.bf16.msra.mxu0 0
      %304 = vmatprep.subr.bf16.mxu0 0
      %305 = vmatpush2.bf16.msra.mxu0 0
      %306 = vmatprep.subr.bf16.mxu0 0
      %307 = vmatpush2.bf16.msra.mxu0 0
      %308 = vmatprep.mubr.bf16.mxu0 0
      %309 = vmatmul.mubr.bf16.gmra.mxu0 %v212
      %v310 = vpop.f32.mrf.mxu0
      %v311 = vadd.f32 0.0, %v310
      %v312 = vpop.f32.mrf.mxu0
      %v313 = vpop.f32.mrf.mxu0
      %v314 = vadd.f32 0.0, %v313
      %v315 = vpop.f32.mrf.mxu0
      %316 = vmatprep.mubr.bf16.mxu0 0
      %317 = vmatmul.mubr.bf16.gmra.mxu0 %v213
      %v318 = vpop.f32.mrf.mxu0
      %v319 = vadd.f32 0.0, %v318
      %v320 = vpop.f32.mrf.mxu0
      %v321 = vpop.f32.mrf.mxu0
      %v322 = vadd.f32 0.0, %v321
      %v323 = vpop.f32.mrf.mxu0
      %324 = vmatprep.mubr.bf16.mxu0 0
      %325 = vmatmul.mubr.bf16.gmra.mxu0 %v214
      %v326 = vpop.f32.mrf.mxu0
      %v327 = vadd.f32 0.0, %v326
      %v328 = vpop.f32.mrf.mxu0
      %v329 = vpop.f32.mrf.mxu0
      %v330 = vadd.f32 0.0, %v329
      %v331 = vpop.f32.mrf.mxu0
      %332 = vmatprep.mubr.bf16.mxu0 0
      %333 = vmatmul.mubr.bf16.gmra.mxu0 %v215
      %v334 = vpop.f32.mrf.mxu0
      %v335 = vadd.f32 0.0, %v334
      %v336 = vpop.f32.mrf.mxu0
      %v337 = vpop.f32.mrf.mxu0
      %v338 = vadd.f32 0.0, %v337
      %v339 = vpop.f32.mrf.mxu0
      %340 = vmatprep.mubr.bf16.mxu0 0
      %341 = vmatmul.mubr.bf16.gmra.mxu0 %v216
      %v342 = vpop.f32.mrf.mxu0
      %v343 = vadd.f32 0.0, %v342
      %v344 = vpop.f32.mrf.mxu0
      %v345 = vpop.f32.mrf.mxu0
      %v346 = vadd.f32 0.0, %v345
      %v347 = vpop.f32.mrf.mxu0
      %348 = vmatprep.mubr.bf16.mxu0 0
      %349 = vmatmul.mubr.bf16.gmra.mxu0 %v217
      %v350 = vpop.f32.mrf.mxu0
      %v351 = vadd.f32 0.0, %v350
      %v352 = vpop.f32.mrf.mxu0
      %v353 = vpop.f32.mrf.mxu0
      %v354 = vadd.f32 0.0, %v353
      %v355 = vpop.f32.mrf.mxu0
      %356 = vmatprep.mubr.bf16.mxu0 0
      %357 = vmatmul.mubr.bf16.gmra.mxu0 %v218
      %v358 = vpop.f32.mrf.mxu0
      %v359 = vadd.f32 0.0, %v358
      %v360 = vpop.f32.mrf.mxu0
      %v361 = vpop.f32.mrf.mxu0
      %v362 = vadd.f32 0.0, %v361
      %v363 = vpop.f32.mrf.mxu0
      %364 = vmatprep.mubr.bf16.mxu0 0
      %365 = vmatmul.mubr.bf16.gmra.mxu0 %v219
      %v366 = vpop.f32.mrf.mxu0
      %v367 = vadd.f32 0.0, %v366
      %v368 = vpop.f32.mrf.mxu0
      %v369 = vpop.f32.mrf.mxu0
      %v370 = vadd.f32 0.0, %v369
      %v371 = vpop.f32.mrf.mxu0
      %372 = vdwg.mxu0
      %v373 = vpack.c.bf16 %v314, %v311
      %v374 = vpack.c.bf16 %v322, %v319
      %v375 = vpack.c.bf16 %v330, %v327
      %v376 = vpack.c.bf16 %v338, %v335
      %v377 = vpack.c.bf16 %v346, %v343
      %v378 = vpack.c.bf16 %v354, %v351
      %v379 = vpack.c.bf16 %v362, %v359
      %v380 = vpack.c.bf16 %v370, %v367
      %v389 = vunpack.c.l.b16 %v373
      %v390 = vunpack.c.h.b16 %v373
      %v391 = vunpack.c.l.b16 %v374
      %v392 = vunpack.c.h.b16 %v374
      %v393 = vunpack.c.l.b16 %v375
      %v394 = vunpack.c.h.b16 %v375
      %v395 = vunpack.c.l.b16 %v376
      %v396 = vunpack.c.h.b16 %v376
      %v397 = vunpack.c.l.b16 %v377
      %v398 = vunpack.c.h.b16 %v377
      %v399 = vunpack.c.l.b16 %v378
      %v400 = vunpack.c.h.b16 %v378
      %v401 = vunpack.c.l.b16 %v379
      %v402 = vunpack.c.h.b16 %v379
      %v403 = vunpack.c.l.b16 %v380
      %v404 = vunpack.c.h.b16 %v380
      %v405 = vpack.c.b16 %v389, %v389
      %v406 = vpack.c.b16 %v390, %v390
      %v407 = vpack.c.b16 %v391, %v391
      %v408 = vpack.c.b16 %v392, %v392
      %v409 = vpack.c.b16 %v393, %v393
      %v410 = vpack.c.b16 %v394, %v394
      %v411 = vpack.c.b16 %v395, %v395
      %v412 = vpack.c.b16 %v396, %v396
      %v413 = vpack.c.b16 %v397, %v397
      %v414 = vpack.c.b16 %v398, %v398
      %v415 = vpack.c.b16 %v399, %v399
      %v416 = vpack.c.b16 %v400, %v400
      %v417 = vpack.c.b16 %v401, %v401
      %v418 = vpack.c.b16 %v402, %v402
      %v419 = vpack.c.b16 %v403, %v403
      %v420 = vpack.c.b16 %v404, %v404
      %437 = vst [vmem:[%s145] sm:$0xf] %v405
      %438 = vst [vmem:[%s145 + $0x4] sm:$0xf] %v406
      %439 = vst [vmem:[%s145 + $0x8] sm:$0xf] %v407
      %440 = vst [vmem:[%s145 + $0xc] sm:$0xf] %v408
      %441 = vst [vmem:[%s145 + $0x10] sm:$0xf] %v409
      %442 = vst [vmem:[%s145 + $0x14] sm:$0xf] %v410
      %443 = vst [vmem:[%s145 + $0x18] sm:$0xf] %v411
      %444 = vst [vmem:[%s145 + $0x1c] sm:$0xf] %v412
      %445 = vst [vmem:[%s145 + $0x20] sm:$0xf] %v413
      %446 = vst [vmem:[%s145 + $0x24] sm:$0xf] %v414
      %447 = vst [vmem:[%s145 + $0x28] sm:$0xf] %v415
      %448 = vst [vmem:[%s145 + $0x2c] sm:$0xf] %v416
      %449 = vst [vmem:[%s145 + $0x30] sm:$0xf] %v417
      %450 = vst [vmem:[%s145 + $0x34] sm:$0xf] %v418
      %451 = vst [vmem:[%s145 + $0x38] sm:$0xf] %v419
      %452 = vst [vmem:[%s145 + $0x3c] sm:$0xf] %v420
      %s453 = smul.u32 16, %s13
      %p454 = scmp.lt.s32.totalorder %s453, 31
      %s455 = scalar_select %p454, %s453, 31
      %s456 = smul.addr %s455, 4
      %s457 = scalar_lea.vmem %s2, %s456
      // Predicated region
      $region29: #{psage_forward.8} parent=27 // pred_check
        %p458 = pneg %p78
      $region30: #{psage_forward.8} parent=27 // pred_check_branch
        %460 = sbr.rel (%p458) target = $region32
      $region31: #{psage_forward.8} parent=27 // pred_region
        %s461 = smul.u32 16, %s13
      $region32: #{psage_forward.8} parent=27 // pred_fallthru
        _
    $region28: #{psage_forward.8} parent=5 // pred_fallthru
      _
    %p462 = scmp.le.s32.totalorder 2, %s8
    // Predicated region
    $region33: #{psage_forward.8} parent=5 // pred_check
      %p463 = pneg %p462
    $region34: #{psage_forward.8} parent=5 // pred_check_branch
      %465 = sbr.rel (%p463) target = $region36
    $region35: #{psage_forward.8} parent=5 // pred_region
      %s466 = ssub.s32 %s8, 2
      // Predicated region
      $region37: #{psage_forward.8} parent=35 // pred_check
        %p467 = pneg %p84
      $region38: #{psage_forward.8} parent=35 // pred_check_branch
        %469 = sbr.rel (%p467) target = $region40
      $region39: #{psage_forward.8} parent=35 // pred_region
        %s470 = smul.u32 16, %s14
        %p471 = scmp.lt.s32.totalorder %s470, 31
        %s472 = scalar_select %p471, %s470, 31
        %s473 = smul.addr %s472, 4
        %s474 = scalar_lea.vmem %s2, %s473
      $region40: #{psage_forward.8} parent=35 // pred_fallthru
        _
    $region36: #{psage_forward.8} parent=5 // pred_fallthru
      _
  $region6: #{psage_forward.8} parent=0 // loop_footer
    %s12 = sadd.s32 1, %s8
  $region7: #{psage_forward.8} parent=0 // loop_footer_branch
    %7 = sbr.rel target = $region3
  $region8: #{psage_forward.8} parent=0 // loop_exit
    _

// kernel: psage_forward.15
$region0: #{psage_forward.15}
  #allocation0 [shape = 'u32[]', space=smem, size = 0x4, offset = 0x4, fixed_abs, tag = 'smem constant byte address 0x4 - core index']
  #allocation1 [shape = 'u32[144,128]{1,0:T(1,128)}', space=vmem, size = 0x12000, scoped, tag = 'internal scratch']
  #allocation2 [shape = 'f32[128,128]{1,0:T(8,128)}', space=vmem, size = 0x10000, scoped, tag = 'scratch operand']
  %s0 = inlined_call_operand.vmem [shape: bf16[256,256], index: 0, kind: input, shape index: {}]
  %s1 = inlined_call_operand.vmem [shape: bf16[256,128], index: 1, kind: input, shape index: {}]
  %s2 = inlined_call_operand.vmem [shape: f32[256,1], index: 2, kind: input, shape index: {}]
  %s3 = inlined_call_operand.vmem [shape: f32[1,128], index: 3, kind: input, shape index: {}]
  %s4 = inlined_call_operand.vmem [shape: f32[256,128], index: 4, kind: output, shape index: {}]
  %s5 = sld [smem:[#allocation0]]
  $region57: #{psage_forward.15} parent=0
    _
  %s7 = ssub.s32 1, %s5
  %s8 = scalar_select 0, %s7, %s5
  loop: start=0, step=1, limit=4
  $region2: #{psage_forward.15} parent=0 // loop_pre_header
    _
  $region3: #{psage_forward.15} parent=0 // loop_header
    %s10 = sphi 0, %s14
    %p11 = scmp.ge.s32.totalorder %s10, 4
    %s17 = sphi 0, %s29
    %s18 = sphi 0, %s25
    %s19 = sphi 0, %s17
    %s20 = sphi 0, %s18
    %s21 = sphi 0, %s19
    %s22 = sphi 0, %s20
    %s34 = sphi 0, %s36
    %s37 = sphi 0, %s34
    %s38 = sphi 0, %s37
    %s54 = sphi 0, %s38
    %s58 = sphi 0, %s58
    %s60 = sphi 0, %s58
    %s61 = sphi 0, %s60
    %s75 = sphi 0, %s61
    %s81 = sphi 0, %s83
    %s84 = sphi 0, %s81
    %s85 = sphi 0, %s84
    %s101 = sphi 0, %s85
    %s105 = sphi 0, %s105
    %s107 = sphi 0, %s105
    %s108 = sphi 0, %s107
    %s122 = sphi 0, %s108
    %s128 = sphi 0, %s130
    %s131 = sphi 0, %s128
    %s132 = sphi 0, %s131
    %s148 = sphi 0, %s132
  $region4: #{psage_forward.15} parent=0 // loop_header_branch
    %13 = sbr.rel (%p11) target = $region8
  $region5: #{psage_forward.15} parent=0 // loop_body
    %s15 = ssub.s32 %s10, 1
    %s16 = ssub.s32 %s10, 2
    %s23 = sadd.s32 1, %s18
    %p24 = scmp.ge.s32.totalorder %s23, 1
    %s25 = scalar_select %p24, 0, %s23
    %s26 = sadd.s32 1, %s17
    %s27 = scalar_select %p24, %s26, %s17
    %p28 = scmp.ge.s32.totalorder %s27, 2
    %s29 = scalar_select %p28, 0, %s27
    %s30 = ssub.s32 %s17, %s29
    %s31 = ssub.s32 %s18, %s25
    %s32 = sor.u32 %s30, %s31
    %p33 = scmp.eq.s32.totalorder %s32, 0
    %s35 = sadd.s32 %s34, 1
    %s36 = scalar_select %p33, %s34, %s35
    %p39 = pneg %p33
    %p40 = scmp.eq.s32.totalorder %s10, 1
    %p41 = por %p39, %p40
    %p42 = scmp.ne.s32.totalorder %s34, %s37
    %p43 = scmp.eq.s32.totalorder %s10, 0
    %p44 = por %p42, %p43
    %p45 = scmp.ne.s32.totalorder %s34, %s37
    %p46 = scmp.eq.s32.totalorder %s15, 1
    %p47 = por %p45, %p46
    %p48 = scmp.ne.s32.totalorder %s37, %s38
    %p49 = scmp.eq.s32.totalorder %s15, 0
    %p50 = por %p48, %p49
    %p51 = scmp.ne.s32.totalorder %s37, %s38
    %p52 = scmp.eq.s32.totalorder %s16, 1
    %p53 = por %p51, %p52
    %p55 = scmp.ne.s32.totalorder %s38, %s54
    %p56 = scmp.eq.s32.totalorder %s16, 0
    %p57 = por %p55, %p56
    %s59 = sadd.s32 %s58, 1
    %p62 = scmp.eq.s32.totalorder %s10, 1
    %p63 = scmp.ne.s32.totalorder %s58, %s60
    %p64 = scmp.eq.s32.totalorder %s10, 0
    %p65 = por %p63, %p64
    %p66 = scmp.ne.s32.totalorder %s58, %s60
    %p67 = scmp.eq.s32.totalorder %s15, 1
    %p68 = por %p66, %p67
    %p69 = scmp.ne.s32.totalorder %s60, %s61
    %p70 = scmp.eq.s32.totalorder %s15, 0
    %p71 = por %p69, %p70
    %p72 = scmp.ne.s32.totalorder %s60, %s61
    %p73 = scmp.eq.s32.totalorder %s16, 1
    %p74 = por %p72, %p73
    %p76 = scmp.ne.s32.totalorder %s61, %s75
    %p77 = scmp.eq.s32.totalorder %s16, 0
    %p78 = por %p76, %p77
    %s79 = ssub.s32 %s17, %s29
    %p80 = scmp.eq.s32.totalorder %s79, 0
    %s82 = sadd.s32 %s81, 1
    %s83 = scalar_select %p80, %s81, %s82
    %p86 = pneg %p80
    %p87 = scmp.eq.s32.totalorder %s10, 1
    %p88 = por %p86, %p87
    %p89 = scmp.ne.s32.totalorder %s81, %s84
    %p90 = scmp.eq.s32.totalorder %s10, 0
    %p91 = por %p89, %p90
    %p92 = scmp.ne.s32.totalorder %s81, %s84
    %p93 = scmp.eq.s32.totalorder %s15, 1
    %p94 = por %p92, %p93
    %p95 = scmp.ne.s32.totalorder %s84, %s85
    %p96 = scmp.eq.s32.totalorder %s15, 0
    %p97 = por %p95, %p96
    %p98 = scmp.ne.s32.totalorder %s84, %s85
    %p99 = scmp.eq.s32.totalorder %s16, 1
    %p100 = por %p98, %p99
    %p102 = scmp.ne.s32.totalorder %s85, %s101
    %p103 = scmp.eq.s32.totalorder %s16, 0
    %p104 = por %p102, %p103
    %s106 = sadd.s32 %s105, 1
    %p109 = scmp.eq.s32.totalorder %s10, 1
    %p110 = scmp.ne.s32.totalorder %s105, %s107
    %p111 = scmp.eq.s32.totalorder %s10, 0
    %p112 = por %p110, %p111
    %p113 = scmp.ne.s32.totalorder %s105, %s107
    %p114 = scmp.eq.s32.totalorder %s15, 1
    %p115 = por %p113, %p114
    %p116 = scmp.ne.s32.totalorder %s107, %s108
    %p117 = scmp.eq.s32.totalorder %s15, 0
    %p118 = por %p116, %p117
    %p119 = scmp.ne.s32.totalorder %s107, %s108
    %p120 = scmp.eq.s32.totalorder %s16, 1
    %p121 = por %p119, %p120
    %p123 = scmp.ne.s32.totalorder %s108, %s122
    %p124 = scmp.eq.s32.totalorder %s16, 0
    %p125 = por %p123, %p124
    %s126 = ssub.s32 %s17, %s29
    %p127 = scmp.eq.s32.totalorder %s126, 0
    %s129 = sadd.s32 %s128, 1
    %s130 = scalar_select %p127, %s128, %s129
    %p133 = pneg %p127
    %p134 = scmp.eq.s32.totalorder %s10, 1
    %p135 = por %p133, %p134
    %p136 = scmp.ne.s32.totalorder %s128, %s131
    %p137 = scmp.eq.s32.totalorder %s10, 0
    %p138 = por %p136, %p137
    %p139 = scmp.ne.s32.totalorder %s128, %s131
    %p140 = scmp.eq.s32.totalorder %s15, 1
    %p141 = por %p139, %p140
    %p142 = scmp.ne.s32.totalorder %s131, %s132
    %p143 = scmp.eq.s32.totalorder %s15, 0
    %p144 = por %p142, %p143
    %p145 = scmp.ne.s32.totalorder %s131, %s132
    %p146 = scmp.eq.s32.totalorder %s16, 1
    %p147 = por %p145, %p146
    %p149 = scmp.ne.s32.totalorder %s132, %s148
    %p150 = scmp.eq.s32.totalorder %s16, 0
    %p151 = por %p149, %p150
    %p152 = scmp.le.s32.totalorder 1, %s10
    %p153 = scmp.lt.s32.totalorder %s10, 3
    %p154 = pnand %p152, %p153
    %p155 = pneg %p154
    // Predicated region
    $region9: #{psage_forward.15} parent=5 // pred_check
      _
    $region10: #{psage_forward.15} parent=5 // pred_check_branch
      %157 = sbr.rel (%p154) target = $region12
    $region11: #{psage_forward.15} parent=5 // pred_region
      %s158 = ssub.s32 %s10, 1
      // Predicated region
      $region13: #{psage_forward.15} parent=11 // pred_check
        %p159 = pneg %p71
      $region14: #{psage_forward.15} parent=11 // pred_check_branch
        %161 = sbr.rel (%p159) target = $region16
      $region15: #{psage_forward.15} parent=11 // pred_region
        _
      $region16: #{psage_forward.15} parent=11 // pred_fallthru
        _
      // Predicated region
      $region17: #{psage_forward.15} parent=11 // pred_check
        %p162 = pneg %p118
      $region18: #{psage_forward.15} parent=11 // pred_check_branch
        %164 = sbr.rel (%p162) target = $region20
      $region19: #{psage_forward.15} parent=11 // pred_region
        _
      $region20: #{psage_forward.15} parent=11 // pred_fallthru
        _
    $region12: #{psage_forward.15} parent=5 // pred_fallthru
      _
    %p165 = scmp.lt.s32.totalorder %s10, 2
    // Predicated region
    $region21: #{psage_forward.15} parent=5 // pred_check
      %p166 = pneg %p165
    $region22: #{psage_forward.15} parent=5 // pred_check_branch
      %168 = sbr.rel (%p166) target = $region24
    $region23: #{psage_forward.15} parent=5 // pred_region
      // Predicated region
      $region25: #{psage_forward.15} parent=23 // pred_check
        %p169 = pneg %p44
      $region26: #{psage_forward.15} parent=23 // pred_check_branch
        %171 = sbr.rel (%p169) target = $region28
      $region27: #{psage_forward.15} parent=23 // pred_region
        %s172 = smul.u32 16, %s17
        %s173 = smul.u32 2, %s18
        %p174 = scmp.lt.s32.totalorder %s172, 31
        %s175 = scalar_select %p174, %s172, 31
        %p176 = scmp.lt.s32.totalorder %s173, 1
        %s177 = scalar_select %p176, %s173, 1
        %s178 = smul.addr %s175, 2
        %s179 = sadd.s32 %s177, %s178
        %s180 = smul.addr %s179, 4
        %s181 = scalar_lea.vmem %s0, %s180
        %s182 = smul.u32 16, %s17
        %s183 = smul.u32 2, %s18
      $region28: #{psage_forward.15} parent=23 // pred_fallthru
        _
      // Predicated region
      $region29: #{psage_forward.15} parent=23 // pred_check
        %p184 = pneg %p91
      $region30: #{psage_forward.15} parent=23 // pred_check_branch
        %186 = sbr.rel (%p184) target = $region32
      $region31: #{psage_forward.15} parent=23 // pred_region
        %s187 = smul.u32 16, %s17
        %p188 = scmp.lt.s32.totalorder %s187, 31
        %s189 = scalar_select %p188, %s187, 31
        %s190 = smul.addr %s189, 8
        %s191 = scalar_lea.vmem %s2, %s190
        %s192 = smul.u32 16, %s17
      $region32: #{psage_forward.15} parent=23 // pred_fallthru
        _
    $region24: #{psage_forward.15} parent=5 // pred_fallthru
      _
    %p193 = scmp.le.s32.totalorder 1, %s10
    %p194 = scmp.lt.s32.totalorder %s10, 3
    %p195 = pnand %p193, %p194
    %p196 = pneg %p195
    // Predicated region
    $region33: #{psage_forward.15} parent=5 // pred_check
      _
    $region34: #{psage_forward.15} parent=5 // pred_check_branch
      %198 = sbr.rel (%p195) target = $region36
    $region35: #{psage_forward.15} parent=5 // pred_region
      %s199 = ssub.s32 %s10, 1
      %s200 = smul.u32 16, %s19
      %s201 = smul.u32 2, %s20
      %p202 = scmp.lt.s32.totalorder %s200, 31
      %s203 = scalar_select %p202, %s200, 31
      %p204 = scmp.lt.s32.totalorder %s201, 1
      %s205 = scalar_select %p204, %s201, 1
      %s206 = smul.addr %s203, 2
      %s207 = sadd.s32 %s205, %s206
      %s208 = smul.addr %s207, 4
      %s209 = scalar_lea.vmem %s0, %s208
      %p210 = pneg %p50
      %p211 = pneg %p47
      %p212 = pneg %p71
      %p213 = pneg %p68
      %s214 = smul.u32 16, %s19
      %p215 = scmp.lt.s32.totalorder %s214, 31
      %s216 = scalar_select %p215, %s214, 31
      %s217 = smul.addr %s216, 8
      %s218 = scalar_lea.vmem %s2, %s217
      %p219 = pneg %p97
      %p220 = pneg %p94
      %p221 = pneg %p118
      %p222 = pneg %p115
      %p223 = pneg %p144
      %p224 = pneg %p141
      %s225 = smul.u32 16, %s19
      %p226 = scmp.lt.s32.totalorder %s225, 31
      %s227 = scalar_select %p226, %s225, 31
      %s228 = smul.addr %s227, 8
      %s229 = scalar_lea.vmem %s4, %s228
      %s230 = smul.u32 16, %s19
      %s231 = smul.u32 2, %s20
      %p232 = scmp.lt.s32.totalorder %s230, 31
      %s233 = scalar_select %p232, %s230, 31
      %p234 = scmp.lt.s32.totalorder %s231, 1
      %s235 = scalar_select %p234, %s231, 1
      %s236 = smul.addr %s233, 2
      %s237 = sadd.s32 %s235, %s236
      %s238 = smul.addr %s237, 4
      %s239 = scalar_lea.vmem %s0, %s238
      %s240 = smul.u32 16, %s19
      %s241 = smul.u32 2, %s20
      %s242 = smul.u32 16, %s19
      %p243 = scmp.lt.s32.totalorder %s242, 31
      %s244 = scalar_select %p243, %s242, 31
      %s245 = smul.addr %s244, 8
      %s246 = scalar_lea.vmem %s2, %s245
      %s247 = smul.u32 16, %s19
      %s248 = smul.u32 16, %s19
      %p249 = scmp.lt.s32.totalorder %s248, 31
      %s250 = scalar_select %p249, %s248, 31
      %s251 = smul.addr %s250, 8
      %s252 = scalar_lea.vmem %s4, %s251
      %s253 = smul.u32 16, %s19
      %p255 = scmp.eq.s32.totalorder %s20, 0
      // Predicated region
      $region37: #{psage_forward.15} parent=35 // pred_check
        %p256 = pneg %p255
      $region38: #{psage_forward.15} parent=35 // pred_check_branch
        %258 = sbr.rel (%p256) target = $region40
      $region39: #{psage_forward.15} parent=35 // pred_region
        %259 = vst [vmem:[#allocation2] sm:$0xff] 0.0
        %260 = vst [vmem:[#allocation2 + $0x8] sm:$0xff] 0.0
        %261 = vst [vmem:[#allocation2 + $0x10] sm:$0xff] 0.0
        %262 = vst [vmem:[#allocation2 + $0x18] sm:$0xff] 0.0
        %263 = vst [vmem:[#allocation2 + $0x20] sm:$0xff] 0.0
        %264 = vst [vmem:[#allocation2 + $0x28] sm:$0xff] 0.0
        %265 = vst [vmem:[#allocation2 + $0x30] sm:$0xff] 0.0
        %266 = vst [vmem:[#allocation2 + $0x38] sm:$0xff] 0.0
        %267 = vst [vmem:[#allocation2 + $0x40] sm:$0xff] 0.0
        %268 = vst [vmem:[#allocation2 + $0x48] sm:$0xff] 0.0
        %269 = vst [vmem:[#allocation2 + $0x50] sm:$0xff] 0.0
        %270 = vst [vmem:[#allocation2 + $0x58] sm:$0xff] 0.0
        %271 = vst [vmem:[#allocation2 + $0x60] sm:$0xff] 0.0
        %272 = vst [vmem:[#allocation2 + $0x68] sm:$0xff] 0.0
        %273 = vst [vmem:[#allocation2 + $0x70] sm:$0xff] 0.0
        %274 = vst [vmem:[#allocation2 + $0x78] sm:$0xff] 0.0
      $region40: #{psage_forward.15} parent=35 // pred_fallthru
        _
      %s275 = smul.u32 %s20, 256
      %s276 = sshra.s32 %s275, 3
      %s277 = sand.u32 %s275, 7
      %s278 = smul.addr %s276, 4
      %s279 = scalar_lea.vmem %s1, %s278
      %v280 = vld [vmem:[%s279] sm:$0xf]
      %v281 = vld [vmem:[%s279 + $0x4] sm:$0xf]
      %v282 = vld [vmem:[%s279 + $0x8] sm:$0xf]
      %v283 = vld [vmem:[%s279 + $0xc] sm:$0xf]
      %v284 = vld [vmem:[%s279 + $0x10] sm:$0xf]
      %v285 = vld [vmem:[%s279 + $0x14] sm:$0xf]
      %v286 = vld [vmem:[%s279 + $0x18] sm:$0xf]
      %v287 = vld [vmem:[%s279 + $0x1c] sm:$0xf]
      %v288 = vld [vmem:[%s279 + $0x20] sm:$0xf]
      %v289 = vld [vmem:[%s279 + $0x24] sm:$0xf]
      %v290 = vld [vmem:[%s279 + $0x28] sm:$0xf]
      %v291 = vld [vmem:[%s279 + $0x2c] sm:$0xf]
      %v292 = vld [vmem:[%s279 + $0x30] sm:$0xf]
      %v293 = vld [vmem:[%s279 + $0x34] sm:$0xf]
      %v294 = vld [vmem:[%s279 + $0x38] sm:$0xf]
      %v295 = vld [vmem:[%s279 + $0x3c] sm:$0xf]
      %v296 = vld [vmem:[%s279 + $0x40] sm:$0xf]
      %v297 = vld [vmem:[%s279 + $0x44] sm:$0xf]
      %v298 = vld [vmem:[%s279 + $0x48] sm:$0xf]
      %v299 = vld [vmem:[%s279 + $0x4c] sm:$0xf]
      %v300 = vld [vmem:[%s279 + $0x50] sm:$0xf]
      %v301 = vld [vmem:[%s279 + $0x54] sm:$0xf]
      %v302 = vld [vmem:[%s279 + $0x58] sm:$0xf]
      %v303 = vld [vmem:[%s279 + $0x5c] sm:$0xf]
      %v304 = vld [vmem:[%s279 + $0x60] sm:$0xf]
      %v305 = vld [vmem:[%s279 + $0x64] sm:$0xf]
      %v306 = vld [vmem:[%s279 + $0x68] sm:$0xf]
      %v307 = vld [vmem:[%s279 + $0x6c] sm:$0xf]
      %v308 = vld [vmem:[%s279 + $0x70] sm:$0xf]
      %v309 = vld [vmem:[%s279 + $0x74] sm:$0xf]
      %v310 = vld [vmem:[%s279 + $0x78] sm:$0xf]
      %v311 = vld [vmem:[%s279 + $0x7c] sm:$0xf]
      %v312 = vld [vmem:[#allocation2] sm:$0xff]
      %v313 = vld [vmem:[#allocation2 + $0x8] sm:$0xff]
      %v314 = vld [vmem:[#allocation2 + $0x10] sm:$0xff]
      %v315 = vld [vmem:[#allocation2 + $0x18] sm:$0xff]
      %v316 = vld [vmem:[#allocation2 + $0x20] sm:$0xff]
      %v317 = vld [vmem:[#allocation2 + $0x28] sm:$0xff]
      %v318 = vld [vmem:[#allocation2 + $0x30] sm:$0xff]
      %v319 = vld [vmem:[#allocation2 + $0x38] sm:$0xff]
      %v320 = vld [vmem:[#allocation2 + $0x40] sm:$0xff]
      %v321 = vld [vmem:[#allocation2 + $0x48] sm:$0xff]
      %v322 = vld [vmem:[#allocation2 + $0x50] sm:$0xff]
      %v323 = vld [vmem:[#allocation2 + $0x58] sm:$0xff]
      %v324 = vld [vmem:[#allocation2 + $0x60] sm:$0xff]
      %v325 = vld [vmem:[#allocation2 + $0x68] sm:$0xff]
      %v326 = vld [vmem:[#allocation2 + $0x70] sm:$0xff]
      %v327 = vld [vmem:[#allocation2 + $0x78] sm:$0xff]
      %v328 = vld [vmem:[%s239] sm:$0xff]
      %v329 = vld [vmem:[%s239 + $0x8] sm:$0xff]
      %v330 = vld [vmem:[%s239 + $0x10] sm:$0xff]
      %v331 = vld [vmem:[%s239 + $0x18] sm:$0xff]
      %v332 = vld [vmem:[%s239 + $0x20] sm:$0xff]
      %v333 = vld [vmem:[%s239 + $0x28] sm:$0xff]
      %v334 = vld [vmem:[%s239 + $0x30] sm:$0xff]
      %v335 = vld [vmem:[%s239 + $0x38] sm:$0xff]
      %v336 = vld [vmem:[%s239 + $0x40] sm:$0xff]
      %v337 = vld [vmem:[%s239 + $0x48] sm:$0xff]
      %v338 = vld [vmem:[%s239 + $0x50] sm:$0xff]
      %v339 = vld [vmem:[%s239 + $0x58] sm:$0xff]
      %v340 = vld [vmem:[%s239 + $0x60] sm:$0xff]
      %v341 = vld [vmem:[%s239 + $0x68] sm:$0xff]
      %v342 = vld [vmem:[%s239 + $0x70] sm:$0xff]
      %v343 = vld [vmem:[%s239 + $0x78] sm:$0xff]
      %v360 = vunpack.c.l.b16 %v328
      %v361 = vunpack.c.h.b16 %v328
      %v362 = vunpack.c.l.b16 %v329
      %v363 = vunpack.c.h.b16 %v329
      %v364 = vunpack.c.l.b16 %v330
      %v365 = vunpack.c.h.b16 %v330
      %v366 = vunpack.c.l.b16 %v331
      %v367 = vunpack.c.h.b16 %v331
      %v368 = vunpack.c.l.b16 %v332
      %v369 = vunpack.c.h.b16 %v332
      %v370 = vunpack.c.l.b16 %v333
      %v371 = vunpack.c.h.b16 %v333
      %v372 = vunpack.c.l.b16 %v334
      %v373 = vunpack.c.h.b16 %v334
      %v374 = vunpack.c.l.b16 %v335
      %v375 = vunpack.c.h.b16 %v335
      %v376 = vunpack.c.l.b16 %v336
      %v377 = vunpack.c.h.b16 %v336
      %v378 = vunpack.c.l.b16 %v337
      %v379 = vunpack.c.h.b16 %v337
      %v380 = vunpack.c.l.b16 %v338
      %v381 = vunpack.c.h.b16 %v338
      %v382 = vunpack.c.l.b16 %v339
      %v383 = vunpack.c.h.b16 %v339
      %v384 = vunpack.c.l.b16 %v340
      %v385 = vunpack.c.h.b16 %v340
      %v386 = vunpack.c.l.b16 %v341
      %v387 = vunpack.c.h.b16 %v341
      %v388 = vunpack.c.l.b16 %v342
      %v389 = vunpack.c.h.b16 %v342
      %v390 = vunpack.c.l.b16 %v343
      %v391 = vunpack.c.h.b16 %v343
      %v392 = vpack.c.b16 %v362, %v360
      %v393 = vpack.c.b16 %v363, %v361
      %v394 = vpack.c.b16 %v366, %v364
      %v395 = vpack.c.b16 %v367, %v365
      %v396 = vpack.c.b16 %v370, %v368
      %v397 = vpack.c.b16 %v371, %v369
      %v398 = vpack.c.b16 %v374, %v372
      %v399 = vpack.c.b16 %v375, %v373
      %v400 = vpack.c.b16 %v378, %v376
      %v401 = vpack.c.b16 %v379, %v377
      %v402 = vpack.c.b16 %v382, %v380
      %v403 = vpack.c.b16 %v383, %v381
      %v404 = vpack.c.b16 %v386, %v384
      %v405 = vpack.c.b16 %v387, %v385
      %v406 = vpack.c.b16 %v390, %v388
      %v407 = vpack.c.b16 %v391, %v389
      %v456 = vunpack.c.l.b16 %v280
      %v457 = vunpack.c.l.b16 %v281
      %v458 = vunpack.c.l.b16 %v282
      %v459 = vunpack.c.l.b16 %v283
      %v460 = vunpack.c.l.b16 %v284
      %v461 = vunpack.c.l.b16 %v285
      %v462 = vunpack.c.l.b16 %v286
      %v463 = vunpack.c.l.b16 %v287
      %v464 = vunpack.c.l.b16 %v288
      %v465 = vunpack.c.l.b16 %v289
      %v466 = vunpack.c.l.b16 %v290
      %v467 = vunpack.c.l.b16 %v291
      %v468 = vunpack.c.l.b16 %v292
      %v469 = vunpack.c.l.b16 %v293
      %v470 = vunpack.c.l.b16 %v294
      %v471 = vunpack.c.l.b16 %v295
      %v472 = vunpack.c.l.b16 %v296
      %v473 = vunpack.c.l.b16 %v297
      %v474 = vunpack.c.l.b16 %v298
      %v475 = vunpack.c.l.b16 %v299
      %v476 = vunpack.c.l.b16 %v300
      %v477 = vunpack.c.l.b16 %v301
      %v478 = vunpack.c.l.b16 %v302
      %v479 = vunpack.c.l.b16 %v303
      %v480 = vunpack.c.l.b16 %v304
      %v481 = vunpack.c.l.b16 %v305
      %v482 = vunpack.c.l.b16 %v306
      %v483 = vunpack.c.l.b16 %v307
      %v484 = vunpack.c.l.b16 %v308
      %v485 = vunpack.c.l.b16 %v309
      %v486 = vunpack.c.l.b16 %v310
      %v487 = vunpack.c.l.b16 %v311
      %v488 = vpack.c.b16 %v457, %v456
      %v489 = vpack.c.b16 %v459, %v458
      %v490 = vpack.c.b16 %v461, %v460
      %v491 = vpack.c.b16 %v463, %v462
      %v492 = vpack.c.b16 %v465, %v464
      %v493 = vpack.c.b16 %v467, %v466
      %v494 = vpack.c.b16 %v469, %v468
      %v495 = vpack.c.b16 %v471, %v470
      %v496 = vpack.c.b16 %v473, %v472
      %v497 = vpack.c.b16 %v475, %v474
      %v498 = vpack.c.b16 %v477, %v476
      %v499 = vpack.c.b16 %v479, %v478
      %v500 = vpack.c.b16 %v481, %v480
      %v501 = vpack.c.b16 %v483, %v482
      %v502 = vpack.c.b16 %v485, %v484
      %v503 = vpack.c.b16 %v487, %v486
      %520 = vmatprep.subr.bf16.mxu0 0
      %521 = vmatpush1.bf16.msra.mxu0 %v495
      %522 = vmatprep.subr.bf16.mxu0 0
      %523 = vmatpush1.bf16.msra.mxu0 %v494
      %524 = vmatprep.subr.bf16.mxu0 0
      %525 = vmatpush1.bf16.msra.mxu0 %v493
      %526 = vmatprep.subr.bf16.mxu0 0
      %527 = vmatpush1.bf16.msra.mxu0 %v492
      %528 = vmatprep.subr.bf16.mxu0 0
      %529 = vmatpush1.bf16.msra.mxu0 %v491
      %530 = vmatprep.subr.bf16.mxu0 0
      %531 = vmatpush1.bf16.msra.mxu0 %v490
      %532 = vmatprep.subr.bf16.mxu0 0
      %533 = vmatpush1.bf16.msra.mxu0 %v489
      %534 = vmatprep.subr.bf16.mxu0 0
      %535 = vmatpush1.bf16.msra.mxu0 %v488
      %536 = vmatprep.subr.bf16.mxu0 0
      %537 = vmatpush2.bf16.msra.mxu0 %v503
      %538 = vmatprep.subr.bf16.mxu0 0
      %539 = vmatpush2.bf16.msra.mxu0 %v502
      %540 = vmatprep.subr.bf16.mxu0 0
      %541 = vmatpush2.bf16.msra.mxu0 %v501
      %542 = vmatprep.subr.bf16.mxu0 0
      %543 = vmatpush2.bf16.msra.mxu0 %v500
      %544 = vmatprep.subr.bf16.mxu0 0
      %545 = vmatpush2.bf16.msra.mxu0 %v499
      %546 = vmatprep.subr.bf16.mxu0 0
      %547 = vmatpush2.bf16.msra.mxu0 %v498
      %548 = vmatprep.subr.bf16.mxu0 0
      %549 = vmatpush2.bf16.msra.mxu0 %v497
      %550 = vmatprep.subr.bf16.mxu0 0
      %551 = vmatpush2.bf16.msra.mxu0 %v496
      %552 = vmatprep.mubr.bf16.mxu0 %v393
      %553 = vmatmul.mubr.bf16.gmra.mxu0 %v392
      %v554 = vpop.f32.mrf.mxu0
      %v555 = vadd.f32 0.0, %v554
      %v556 = vpop.f32.mrf.mxu0
      %v557 = vpop.f32.mrf.mxu0
      %v558 = vadd.f32 0.0, %v557
      %v559 = vpop.f32.mrf.mxu0
      %560 = vmatprep.mubr.bf16.mxu0 %v395
      %561 = vmatmul.mubr.bf16.gmra.mxu0 %v394
      %v562 = vpop.f32.mrf.mxu0
      %v563 = vadd.f32 0.0, %v562
      %v564 = vpop.f32.mrf.mxu0
      %v565 = vpop.f32.mrf.mxu0
      %v566 = vadd.f32 0.0, %v565
      %v567 = vpop.f32.mrf.mxu0
      %568 = vmatprep.mubr.bf16.mxu0 %v397
      %569 = vmatmul.mubr.bf16.gmra.mxu0 %v396
      %v570 = vpop.f32.mrf.mxu0
      %v571 = vadd.f32 0.0, %v570
      %v572 = vpop.f32.mrf.mxu0
      %v573 = vpop.f32.mrf.mxu0
      %v574 = vadd.f32 0.0, %v573
      %v575 = vpop.f32.mrf.mxu0
      %576 = vmatprep.mubr.bf16.mxu0 %v399
      %577 = vmatmul.mubr.bf16.gmra.mxu0 %v398
      %v578 = vpop.f32.mrf.mxu0
      %v579 = vadd.f32 0.0, %v578
      %v580 = vpop.f32.mrf.mxu0
      %v581 = vpop.f32.mrf.mxu0
      %v582 = vadd.f32 0.0, %v581
      %v583 = vpop.f32.mrf.mxu0
      %584 = vmatprep.mubr.bf16.mxu0 %v401
      %585 = vmatmul.mubr.bf16.gmra.mxu0 %v400
      %v586 = vpop.f32.mrf.mxu0
      %v587 = vadd.f32 0.0, %v586
      %v588 = vpop.f32.mrf.mxu0
      %v589 = vpop.f32.mrf.mxu0
      %v590 = vadd.f32 0.0, %v589
      %v591 = vpop.f32.mrf.mxu0
      %592 = vmatprep.mubr.bf16.mxu0 %v403
      %593 = vmatmul.mubr.bf16.gmra.mxu0 %v402
      %v594 = vpop.f32.mrf.mxu0
      %v595 = vadd.f32 0.0, %v594
      %v596 = vpop.f32.mrf.mxu0
      %v597 = vpop.f32.mrf.mxu0
      %v598 = vadd.f32 0.0, %v597
      %v599 = vpop.f32.mrf.mxu0
      %600 = vmatprep.mubr.bf16.mxu0 %v405
      %601 = vmatmul.mubr.bf16.gmra.mxu0 %v404
      %v602 = vpop.f32.mrf.mxu0
      %v603 = vadd.f32 0.0, %v602
      %v604 = vpop.f32.mrf.mxu0
      %v605 = vpop.f32.mrf.mxu0
      %v606 = vadd.f32 0.0, %v605
      %v607 = vpop.f32.mrf.mxu0
      %608 = vmatprep.mubr.bf16.mxu0 %v407
      %609 = vmatmul.mubr.bf16.gmra.mxu0 %v406
      %v610 = vpop.f32.mrf.mxu0
      %v611 = vadd.f32 0.0, %v610
      %v612 = vpop.f32.mrf.mxu0
      %v613 = vpop.f32.mrf.mxu0
      %v614 = vadd.f32 0.0, %v613
      %v615 = vpop.f32.mrf.mxu0
      %616 = vdwg.mxu0
      %v617 = vadd.f32 %v312, %v555
      %v618 = vadd.f32 %v313, %v558
      %v619 = vadd.f32 %v314, %v563
      %v620 = vadd.f32 %v315, %v566
      %v621 = vadd.f32 %v316, %v571
      %v622 = vadd.f32 %v317, %v574
      %v623 = vadd.f32 %v318, %v579
      %v624 = vadd.f32 %v319, %v582
      %v625 = vadd.f32 %v320, %v587
      %v626 = vadd.f32 %v321, %v590
      %v627 = vadd.f32 %v322, %v595
      %v628 = vadd.f32 %v323, %v598
      %v629 = vadd.f32 %v324, %v603
      %v630 = vadd.f32 %v325, %v606
      %v631 = vadd.f32 %v326, %v611
      %v632 = vadd.f32 %v327, %v614
      %633 = vst [vmem:[#allocation2] sm:$0xff] %v617
      %634 = vst [vmem:[#allocation2 + $0x8] sm:$0xff] %v618
      %635 = vst [vmem:[#allocation2 + $0x10] sm:$0xff] %v619
      %636 = vst [vmem:[#allocation2 + $0x18] sm:$0xff] %v620
      %637 = vst [vmem:[#allocation2 + $0x20] sm:$0xff] %v621
      %638 = vst [vmem:[#allocation2 + $0x28] sm:$0xff] %v622
      %639 = vst [vmem:[#allocation2 + $0x30] sm:$0xff] %v623
      %640 = vst [vmem:[#allocation2 + $0x38] sm:$0xff] %v624
      %641 = vst [vmem:[#allocation2 + $0x40] sm:$0xff] %v625
      %642 = vst [vmem:[#allocation2 + $0x48] sm:$0xff] %v626
      %643 = vst [vmem:[#allocation2 + $0x50] sm:$0xff] %v627
      %644 = vst [vmem:[#allocation2 + $0x58] sm:$0xff] %v628
      %645 = vst [vmem:[#allocation2 + $0x60] sm:$0xff] %v629
      %646 = vst [vmem:[#allocation2 + $0x68] sm:$0xff] %v630
      %647 = vst [vmem:[#allocation2 + $0x70] sm:$0xff] %v631
      %648 = vst [vmem:[#allocation2 + $0x78] sm:$0xff] %v632
      // Predicated region
      $region41: #{psage_forward.15} parent=35 // pred_check
        %p649 = pneg %p255
      $region42: #{psage_forward.15} parent=35 // pred_check_branch
        %651 = sbr.rel (%p649) target = $region44
      $region43: #{psage_forward.15} parent=35 // pred_region
        %v652 = vld [vmem:[#allocation2] sm:$0xff]
        %v653 = vld [vmem:[#allocation2 + $0x8] sm:$0xff]
        %v654 = vld [vmem:[#allocation2 + $0x10] sm:$0xff]
        %v655 = vld [vmem:[#allocation2 + $0x18] sm:$0xff]
        %v656 = vld [vmem:[#allocation2 + $0x20] sm:$0xff]
        %v657 = vld [vmem:[#allocation2 + $0x28] sm:$0xff]
        %v658 = vld [vmem:[#allocation2 + $0x30] sm:$0xff]
        %v659 = vld [vmem:[#allocation2 + $0x38] sm:$0xff]
        %v660 = vld [vmem:[#allocation2 + $0x40] sm:$0xff]
        %v661 = vld [vmem:[#allocation2 + $0x48] sm:$0xff]
        %v662 = vld [vmem:[#allocation2 + $0x50] sm:$0xff]
        %v663 = vld [vmem:[#allocation2 + $0x58] sm:$0xff]
        %v664 = vld [vmem:[#allocation2 + $0x60] sm:$0xff]
        %v665 = vld [vmem:[#allocation2 + $0x68] sm:$0xff]
        %v666 = vld [vmem:[#allocation2 + $0x70] sm:$0xff]
        %v667 = vld [vmem:[#allocation2 + $0x78] sm:$0xff]
        %v668 = vld [vmem:[%s246] sm:$0xff]
        %v669 = vld [vmem:[%s246 + $0x8] sm:$0xff]
        %v670 = vld [vmem:[%s246 + $0x10] sm:$0xff]
        %v671 = vld [vmem:[%s246 + $0x18] sm:$0xff]
        %v672 = vld [vmem:[%s246 + $0x20] sm:$0xff]
        %v673 = vld [vmem:[%s246 + $0x28] sm:$0xff]
        %v674 = vld [vmem:[%s246 + $0x30] sm:$0xff]
        %v675 = vld [vmem:[%s246 + $0x38] sm:$0xff]
        %v676 = vld [vmem:[%s246 + $0x40] sm:$0xff]
        %v677 = vld [vmem:[%s246 + $0x48] sm:$0xff]
        %v678 = vld [vmem:[%s246 + $0x50] sm:$0xff]
        %v679 = vld [vmem:[%s246 + $0x58] sm:$0xff]
        %v680 = vld [vmem:[%s246 + $0x60] sm:$0xff]
        %v681 = vld [vmem:[%s246 + $0x68] sm:$0xff]
        %v682 = vld [vmem:[%s246 + $0x70] sm:$0xff]
        %v683 = vld [vmem:[%s246 + $0x78] sm:$0xff]
        %685 = vset.pattern.permute.xlu0 0
        %686 = vperm.xlu0 %685, %v668
        %v687 = vpop.permute.xlu0 %686
        %690 = vset.pattern.permute.xlu0 0
        %691 = vperm.xlu0 %690, %v669
        %v692 = vpop.permute.xlu0 %691
        %695 = vset.pattern.permute.xlu0 0
        %696 = vperm.xlu0 %695, %v670
        %v697 = vpop.permute.xlu0 %696
        %700 = vset.pattern.permute.xlu0 0
        %701 = vperm.xlu0 %700, %v671
        %v702 = vpop.permute.xlu0 %701
        %705 = vset.pattern.permute.xlu0 0
        %706 = vperm.xlu0 %705, %v672
        %v707 = vpop.permute.xlu0 %706
        %710 = vset.pattern.permute.xlu0 0
        %711 = vperm.xlu0 %710, %v673
        %v712 = vpop.permute.xlu0 %711
        %715 = vset.pattern.permute.xlu0 0
        %716 = vperm.xlu0 %715, %v674
        %v717 = vpop.permute.xlu0 %716
        %720 = vset.pattern.permute.xlu0 0
        %721 = vperm.xlu0 %720, %v675
        %v722 = vpop.permute.xlu0 %721
        %725 = vset.pattern.permute.xlu0 0
        %726 = vperm.xlu0 %725, %v676
        %v727 = vpop.permute.xlu0 %726
        %730 = vset.pattern.permute.xlu0 0
        %731 = vperm.xlu0 %730, %v677
        %v732 = vpop.permute.xlu0 %731
        %735 = vset.pattern.permute.xlu0 0
        %736 = vperm.xlu0 %735, %v678
        %v737 = vpop.permute.xlu0 %736
        %740 = vset.pattern.permute.xlu0 0
        %741 = vperm.xlu0 %740, %v679
        %v742 = vpop.permute.xlu0 %741
        %745 = vset.pattern.permute.xlu0 0
        %746 = vperm.xlu0 %745, %v680
        %v747 = vpop.permute.xlu0 %746
        %750 = vset.pattern.permute.xlu0 0
        %751 = vperm.xlu0 %750, %v681
        %v752 = vpop.permute.xlu0 %751
        %755 = vset.pattern.permute.xlu0 0
        %756 = vperm.xlu0 %755, %v682
        %v757 = vpop.permute.xlu0 %756
        %760 = vset.pattern.permute.xlu0 0
        %761 = vperm.xlu0 %760, %v683
        %v762 = vpop.permute.xlu0 %761
        %v764 = vmul.f32 %v652, %v687
        %v765 = vmul.f32 %v653, %v692
        %v766 = vmul.f32 %v654, %v697
        %v767 = vmul.f32 %v655, %v702
        %v768 = vmul.f32 %v656, %v707
        %v769 = vmul.f32 %v657, %v712
        %v770 = vmul.f32 %v658, %v717
        %v771 = vmul.f32 %v659, %v722
        %v772 = vmul.f32 %v660, %v727
        %v773 = vmul.f32 %v661, %v732
        %v774 = vmul.f32 %v662, %v737
        %v775 = vmul.f32 %v663, %v742
        %v776 = vmul.f32 %v664, %v747
        %v777 = vmul.f32 %v665, %v752
        %v778 = vmul.f32 %v666, %v757
        %v779 = vmul.f32 %v667, %v762
        %v780 = vld [vmem:[%s3] sm:$0x1]
        %v782 = vlaneseq
        %v783 = vshrl.u32 %v782, 7
        %v784 = vsub.s32 0, %v783
        %v785 = vrot.slane %v780, %v784
        %v787 = vadd.f32 %v764, %v785
        %v788 = vadd.f32 %v765, %v785
        %v789 = vadd.f32 %v766, %v785
        %v790 = vadd.f32 %v767, %v785
        %v791 = vadd.f32 %v768, %v785
        %v792 = vadd.f32 %v769, %v785
        %v793 = vadd.f32 %v770, %v785
        %v794 = vadd.f32 %v771, %v785
        %v795 = vadd.f32 %v772, %v785
        %v796 = vadd.f32 %v773, %v785
        %v797 = vadd.f32 %v774, %v785
        %v798 = vadd.f32 %v775, %v785
        %v799 = vadd.f32 %v776, %v785
        %v800 = vadd.f32 %v777, %v785
        %v801 = vadd.f32 %v778, %v785
        %v802 = vadd.f32 %v779, %v785
        %v803 = vtanh.pop %v787
        %v804 = vtanh.pop %v788
        %v805 = vtanh.pop %v789
        %v806 = vtanh.pop %v790
        %v807 = vtanh.pop %v791
        %v808 = vtanh.pop %v792
        %v809 = vtanh.pop %v793
        %v810 = vtanh.pop %v794
        %v811 = vtanh.pop %v795
        %v812 = vtanh.pop %v796
        %v813 = vtanh.pop %v797
        %v814 = vtanh.pop %v798
        %v815 = vtanh.pop %v799
        %v816 = vtanh.pop %v800
        %v817 = vtanh.pop %v801
        %v818 = vtanh.pop %v802
        %819 = vst [vmem:[%s252] sm:$0xff] %v803
        %820 = vst [vmem:[%s252 + $0x8] sm:$0xff] %v804
        %821 = vst [vmem:[%s252 + $0x10] sm:$0xff] %v805
        %822 = vst [vmem:[%s252 + $0x18] sm:$0xff] %v806
        %823 = vst [vmem:[%s252 + $0x20] sm:$0xff] %v807
        %824 = vst [vmem:[%s252 + $0x28] sm:$0xff] %v808
        %825 = vst [vmem:[%s252 + $0x30] sm:$0xff] %v809
        %826 = vst [vmem:[%s252 + $0x38] sm:$0xff] %v810
        %827 = vst [vmem:[%s252 + $0x40] sm:$0xff] %v811
        %828 = vst [vmem:[%s252 + $0x48] sm:$0xff] %v812
        %829 = vst [vmem:[%s252 + $0x50] sm:$0xff] %v813
        %830 = vst [vmem:[%s252 + $0x58] sm:$0xff] %v814
        %831 = vst [vmem:[%s252 + $0x60] sm:$0xff] %v815
        %832 = vst [vmem:[%s252 + $0x68] sm:$0xff] %v816
        %833 = vst [vmem:[%s252 + $0x70] sm:$0xff] %v817
        %834 = vst [vmem:[%s252 + $0x78] sm:$0xff] %v818
      $region44: #{psage_forward.15} parent=35 // pred_fallthru
        _
      %s835 = smul.u32 16, %s19
      %p836 = scmp.lt.s32.totalorder %s835, 31
      %s837 = scalar_select %p836, %s835, 31
      %s838 = smul.addr %s837, 8
      %s839 = scalar_lea.vmem %s4, %s838
      // Predicated region
      $region45: #{psage_forward.15} parent=35 // pred_check
        %p840 = pneg %p141
      $region46: #{psage_forward.15} parent=35 // pred_check_branch
        %842 = sbr.rel (%p840) target = $region48
      $region47: #{psage_forward.15} parent=35 // pred_region
        %s843 = smul.u32 16, %s19
      $region48: #{psage_forward.15} parent=35 // pred_fallthru
        _
    $region36: #{psage_forward.15} parent=5 // pred_fallthru
      _
    %p844 = scmp.le.s32.totalorder 2, %s10
    // Predicated region
    $region49: #{psage_forward.15} parent=5 // pred_check
      %p845 = pneg %p844
    $region50: #{psage_forward.15} parent=5 // pred_check_branch
      %847 = sbr.rel (%p845) target = $region52
    $region51: #{psage_forward.15} parent=5 // pred_region
      %s848 = ssub.s32 %s10, 2
      // Predicated region
      $region53: #{psage_forward.15} parent=51 // pred_check
        %p849 = pneg %p147
      $region54: #{psage_forward.15} parent=51 // pred_check_branch
        %851 = sbr.rel (%p849) target = $region56
      $region55: #{psage_forward.15} parent=51 // pred_region
        %s852 = smul.u32 16, %s21
        %p853 = scmp.lt.s32.totalorder %s852, 31
        %s854 = scalar_select %p853, %s852, 31
        %s855 = smul.addr %s854, 8
        %s856 = scalar_lea.vmem %s4, %s855
      $region56: #{psage_forward.15} parent=51 // pred_fallthru
        _
    $region52: #{psage_forward.15} parent=5 // pred_fallthru
      _
  $region6: #{psage_forward.15} parent=0 // loop_footer
    %s14 = sadd.s32 1, %s10
  $region7: #{psage_forward.15} parent=0 // loop_footer_branch
    %9 = sbr.rel target = $region3
  $region8: #{psage_forward.15} parent=0 // loop_exit
    _

// kernel: psage_forward.9
$region0: #{psage_forward.9}
  #allocation0 [shape = 'u32[]', space=smem, size = 0x4, offset = 0x4, fixed_abs, tag = 'smem constant byte address 0x4 - core index']
  #allocation1 [shape = 'u32[144,128]{1,0:T(1,128)}', space=vmem, size = 0x12000, scoped, tag = 'internal scratch']
  #allocation2 [shape = 'f32[128,128]{1,0:T(8,128)}', space=vmem, size = 0x10000, scoped, tag = 'scratch operand']
  %s0 = inlined_call_operand.vmem [shape: bf16[256,256], index: 0, kind: input, shape index: {}]
  %s1 = inlined_call_operand.vmem [shape: bf16[256,128], index: 1, kind: input, shape index: {}]
  %s2 = inlined_call_operand.vmem [shape: f32[256,1], index: 2, kind: input, shape index: {}]
  %s3 = inlined_call_operand.vmem [shape: f32[1,128], index: 3, kind: input, shape index: {}]
  %s4 = inlined_call_operand.vmem [shape: bf16[256,128], index: 4, kind: output, shape index: {}]
  %s5 = sld [smem:[#allocation0]]
  $region57: #{psage_forward.9} parent=0
    _
  %s7 = ssub.s32 1, %s5
  %s8 = scalar_select 0, %s7, %s5
  loop: start=0, step=1, limit=4
  $region2: #{psage_forward.9} parent=0 // loop_pre_header
    _
  $region3: #{psage_forward.9} parent=0 // loop_header
    %s10 = sphi 0, %s14
    %p11 = scmp.ge.s32.totalorder %s10, 4
    %s17 = sphi 0, %s29
    %s18 = sphi 0, %s25
    %s19 = sphi 0, %s17
    %s20 = sphi 0, %s18
    %s21 = sphi 0, %s19
    %s22 = sphi 0, %s20
    %s34 = sphi 0, %s36
    %s37 = sphi 0, %s34
    %s38 = sphi 0, %s37
    %s54 = sphi 0, %s38
    %s58 = sphi 0, %s58
    %s60 = sphi 0, %s58
    %s61 = sphi 0, %s60
    %s75 = sphi 0, %s61
    %s81 = sphi 0, %s83
    %s84 = sphi 0, %s81
    %s85 = sphi 0, %s84
    %s101 = sphi 0, %s85
    %s105 = sphi 0, %s105
    %s107 = sphi 0, %s105
    %s108 = sphi 0, %s107
    %s122 = sphi 0, %s108
    %s128 = sphi 0, %s130
    %s131 = sphi 0, %s128
    %s132 = sphi 0, %s131
    %s148 = sphi 0, %s132
  $region4: #{psage_forward.9} parent=0 // loop_header_branch
    %13 = sbr.rel (%p11) target = $region8
  $region5: #{psage_forward.9} parent=0 // loop_body
    %s15 = ssub.s32 %s10, 1
    %s16 = ssub.s32 %s10, 2
    %s23 = sadd.s32 1, %s18
    %p24 = scmp.ge.s32.totalorder %s23, 1
    %s25 = scalar_select %p24, 0, %s23
    %s26 = sadd.s32 1, %s17
    %s27 = scalar_select %p24, %s26, %s17
    %p28 = scmp.ge.s32.totalorder %s27, 2
    %s29 = scalar_select %p28, 0, %s27
    %s30 = ssub.s32 %s17, %s29
    %s31 = ssub.s32 %s18, %s25
    %s32 = sor.u32 %s30, %s31
    %p33 = scmp.eq.s32.totalorder %s32, 0
    %s35 = sadd.s32 %s34, 1
    %s36 = scalar_select %p33, %s34, %s35
    %p39 = pneg %p33
    %p40 = scmp.eq.s32.totalorder %s10, 1
    %p41 = por %p39, %p40
    %p42 = scmp.ne.s32.totalorder %s34, %s37
    %p43 = scmp.eq.s32.totalorder %s10, 0
    %p44 = por %p42, %p43
    %p45 = scmp.ne.s32.totalorder %s34, %s37
    %p46 = scmp.eq.s32.totalorder %s15, 1
    %p47 = por %p45, %p46
    %p48 = scmp.ne.s32.totalorder %s37, %s38
    %p49 = scmp.eq.s32.totalorder %s15, 0
    %p50 = por %p48, %p49
    %p51 = scmp.ne.s32.totalorder %s37, %s38
    %p52 = scmp.eq.s32.totalorder %s16, 1
    %p53 = por %p51, %p52
    %p55 = scmp.ne.s32.totalorder %s38, %s54
    %p56 = scmp.eq.s32.totalorder %s16, 0
    %p57 = por %p55, %p56
    %s59 = sadd.s32 %s58, 1
    %p62 = scmp.eq.s32.totalorder %s10, 1
    %p63 = scmp.ne.s32.totalorder %s58, %s60
    %p64 = scmp.eq.s32.totalorder %s10, 0
    %p65 = por %p63, %p64
    %p66 = scmp.ne.s32.totalorder %s58, %s60
    %p67 = scmp.eq.s32.totalorder %s15, 1
    %p68 = por %p66, %p67
    %p69 = scmp.ne.s32.totalorder %s60, %s61
    %p70 = scmp.eq.s32.totalorder %s15, 0
    %p71 = por %p69, %p70
    %p72 = scmp.ne.s32.totalorder %s60, %s61
    %p73 = scmp.eq.s32.totalorder %s16, 1
    %p74 = por %p72, %p73
    %p76 = scmp.ne.s32.totalorder %s61, %s75
    %p77 = scmp.eq.s32.totalorder %s16, 0
    %p78 = por %p76, %p77
    %s79 = ssub.s32 %s17, %s29
    %p80 = scmp.eq.s32.totalorder %s79, 0
    %s82 = sadd.s32 %s81, 1
    %s83 = scalar_select %p80, %s81, %s82
    %p86 = pneg %p80
    %p87 = scmp.eq.s32.totalorder %s10, 1
    %p88 = por %p86, %p87
    %p89 = scmp.ne.s32.totalorder %s81, %s84
    %p90 = scmp.eq.s32.totalorder %s10, 0
    %p91 = por %p89, %p90
    %p92 = scmp.ne.s32.totalorder %s81, %s84
    %p93 = scmp.eq.s32.totalorder %s15, 1
    %p94 = por %p92, %p93
    %p95 = scmp.ne.s32.totalorder %s84, %s85
    %p96 = scmp.eq.s32.totalorder %s15, 0
    %p97 = por %p95, %p96
    %p98 = scmp.ne.s32.totalorder %s84, %s85
    %p99 = scmp.eq.s32.totalorder %s16, 1
    %p100 = por %p98, %p99
    %p102 = scmp.ne.s32.totalorder %s85, %s101
    %p103 = scmp.eq.s32.totalorder %s16, 0
    %p104 = por %p102, %p103
    %s106 = sadd.s32 %s105, 1
    %p109 = scmp.eq.s32.totalorder %s10, 1
    %p110 = scmp.ne.s32.totalorder %s105, %s107
    %p111 = scmp.eq.s32.totalorder %s10, 0
    %p112 = por %p110, %p111
    %p113 = scmp.ne.s32.totalorder %s105, %s107
    %p114 = scmp.eq.s32.totalorder %s15, 1
    %p115 = por %p113, %p114
    %p116 = scmp.ne.s32.totalorder %s107, %s108
    %p117 = scmp.eq.s32.totalorder %s15, 0
    %p118 = por %p116, %p117
    %p119 = scmp.ne.s32.totalorder %s107, %s108
    %p120 = scmp.eq.s32.totalorder %s16, 1
    %p121 = por %p119, %p120
    %p123 = scmp.ne.s32.totalorder %s108, %s122
    %p124 = scmp.eq.s32.totalorder %s16, 0
    %p125 = por %p123, %p124
    %s126 = ssub.s32 %s17, %s29
    %p127 = scmp.eq.s32.totalorder %s126, 0
    %s129 = sadd.s32 %s128, 1
    %s130 = scalar_select %p127, %s128, %s129
    %p133 = pneg %p127
    %p134 = scmp.eq.s32.totalorder %s10, 1
    %p135 = por %p133, %p134
    %p136 = scmp.ne.s32.totalorder %s128, %s131
    %p137 = scmp.eq.s32.totalorder %s10, 0
    %p138 = por %p136, %p137
    %p139 = scmp.ne.s32.totalorder %s128, %s131
    %p140 = scmp.eq.s32.totalorder %s15, 1
    %p141 = por %p139, %p140
    %p142 = scmp.ne.s32.totalorder %s131, %s132
    %p143 = scmp.eq.s32.totalorder %s15, 0
    %p144 = por %p142, %p143
    %p145 = scmp.ne.s32.totalorder %s131, %s132
    %p146 = scmp.eq.s32.totalorder %s16, 1
    %p147 = por %p145, %p146
    %p149 = scmp.ne.s32.totalorder %s132, %s148
    %p150 = scmp.eq.s32.totalorder %s16, 0
    %p151 = por %p149, %p150
    %p152 = scmp.le.s32.totalorder 1, %s10
    %p153 = scmp.lt.s32.totalorder %s10, 3
    %p154 = pnand %p152, %p153
    %p155 = pneg %p154
    // Predicated region
    $region9: #{psage_forward.9} parent=5 // pred_check
      _
    $region10: #{psage_forward.9} parent=5 // pred_check_branch
      %157 = sbr.rel (%p154) target = $region12
    $region11: #{psage_forward.9} parent=5 // pred_region
      %s158 = ssub.s32 %s10, 1
      // Predicated region
      $region13: #{psage_forward.9} parent=11 // pred_check
        %p159 = pneg %p71
      $region14: #{psage_forward.9} parent=11 // pred_check_branch
        %161 = sbr.rel (%p159) target = $region16
      $region15: #{psage_forward.9} parent=11 // pred_region
        _
      $region16: #{psage_forward.9} parent=11 // pred_fallthru
        _
      // Predicated region
      $region17: #{psage_forward.9} parent=11 // pred_check
        %p162 = pneg %p118
      $region18: #{psage_forward.9} parent=11 // pred_check_branch
        %164 = sbr.rel (%p162) target = $region20
      $region19: #{psage_forward.9} parent=11 // pred_region
        _
      $region20: #{psage_forward.9} parent=11 // pred_fallthru
        _
    $region12: #{psage_forward.9} parent=5 // pred_fallthru
      _
    %p165 = scmp.lt.s32.totalorder %s10, 2
    // Predicated region
    $region21: #{psage_forward.9} parent=5 // pred_check
      %p166 = pneg %p165
    $region22: #{psage_forward.9} parent=5 // pred_check_branch
      %168 = sbr.rel (%p166) target = $region24
    $region23: #{psage_forward.9} parent=5 // pred_region
      // Predicated region
      $region25: #{psage_forward.9} parent=23 // pred_check
        %p169 = pneg %p44
      $region26: #{psage_forward.9} parent=23 // pred_check_branch
        %171 = sbr.rel (%p169) target = $region28
      $region27: #{psage_forward.9} parent=23 // pred_region
        %s172 = smul.u32 16, %s17
        %s173 = smul.u32 2, %s18
        %p174 = scmp.lt.s32.totalorder %s172, 31
        %s175 = scalar_select %p174, %s172, 31
        %p176 = scmp.lt.s32.totalorder %s173, 1
        %s177 = scalar_select %p176, %s173, 1
        %s178 = smul.addr %s175, 2
        %s179 = sadd.s32 %s177, %s178
        %s180 = smul.addr %s179, 4
        %s181 = scalar_lea.vmem %s0, %s180
        %s182 = smul.u32 16, %s17
        %s183 = smul.u32 2, %s18
      $region28: #{psage_forward.9} parent=23 // pred_fallthru
        _
      // Predicated region
      $region29: #{psage_forward.9} parent=23 // pred_check
        %p184 = pneg %p91
      $region30: #{psage_forward.9} parent=23 // pred_check_branch
        %186 = sbr.rel (%p184) target = $region32
      $region31: #{psage_forward.9} parent=23 // pred_region
        %s187 = smul.u32 16, %s17
        %p188 = scmp.lt.s32.totalorder %s187, 31
        %s189 = scalar_select %p188, %s187, 31
        %s190 = smul.addr %s189, 8
        %s191 = scalar_lea.vmem %s2, %s190
        %s192 = smul.u32 16, %s17
      $region32: #{psage_forward.9} parent=23 // pred_fallthru
        _
    $region24: #{psage_forward.9} parent=5 // pred_fallthru
      _
    %p193 = scmp.le.s32.totalorder 1, %s10
    %p194 = scmp.lt.s32.totalorder %s10, 3
    %p195 = pnand %p193, %p194
    %p196 = pneg %p195
    // Predicated region
    $region33: #{psage_forward.9} parent=5 // pred_check
      _
    $region34: #{psage_forward.9} parent=5 // pred_check_branch
      %198 = sbr.rel (%p195) target = $region36
    $region35: #{psage_forward.9} parent=5 // pred_region
      %s199 = ssub.s32 %s10, 1
      %s200 = smul.u32 16, %s19
      %s201 = smul.u32 2, %s20
      %p202 = scmp.lt.s32.totalorder %s200, 31
      %s203 = scalar_select %p202, %s200, 31
      %p204 = scmp.lt.s32.totalorder %s201, 1
      %s205 = scalar_select %p204, %s201, 1
      %s206 = smul.addr %s203, 2
      %s207 = sadd.s32 %s205, %s206
      %s208 = smul.addr %s207, 4
      %s209 = scalar_lea.vmem %s0, %s208
      %p210 = pneg %p50
      %p211 = pneg %p47
      %p212 = pneg %p71
      %p213 = pneg %p68
      %s214 = smul.u32 16, %s19
      %p215 = scmp.lt.s32.totalorder %s214, 31
      %s216 = scalar_select %p215, %s214, 31
      %s217 = smul.addr %s216, 8
      %s218 = scalar_lea.vmem %s2, %s217
      %p219 = pneg %p97
      %p220 = pneg %p94
      %p221 = pneg %p118
      %p222 = pneg %p115
      %p223 = pneg %p144
      %p224 = pneg %p141
      %s225 = smul.u32 16, %s19
      %p226 = scmp.lt.s32.totalorder %s225, 31
      %s227 = scalar_select %p226, %s225, 31
      %s228 = smul.addr %s227, 4
      %s229 = scalar_lea.vmem %s4, %s228
      %s230 = smul.u32 16, %s19
      %s231 = smul.u32 2, %s20
      %p232 = scmp.lt.s32.totalorder %s230, 31
      %s233 = scalar_select %p232, %s230, 31
      %p234 = scmp.lt.s32.totalorder %s231, 1
      %s235 = scalar_select %p234, %s231, 1
      %s236 = smul.addr %s233, 2
      %s237 = sadd.s32 %s235, %s236
      %s238 = smul.addr %s237, 4
      %s239 = scalar_lea.vmem %s0, %s238
      %s240 = smul.u32 16, %s19
      %s241 = smul.u32 2, %s20
      %s242 = smul.u32 16, %s19
      %p243 = scmp.lt.s32.totalorder %s242, 31
      %s244 = scalar_select %p243, %s242, 31
      %s245 = smul.addr %s244, 8
      %s246 = scalar_lea.vmem %s2, %s245
      %s247 = smul.u32 16, %s19
      %s248 = smul.u32 16, %s19
      %p249 = scmp.lt.s32.totalorder %s248, 31
      %s250 = scalar_select %p249, %s248, 31
      %s251 = smul.addr %s250, 4
      %s252 = scalar_lea.vmem %s4, %s251
      %s253 = smul.u32 16, %s19
      %p255 = scmp.eq.s32.totalorder %s20, 0
      // Predicated region
      $region37: #{psage_forward.9} parent=35 // pred_check
        %p256 = pneg %p255
      $region38: #{psage_forward.9} parent=35 // pred_check_branch
        %258 = sbr.rel (%p256) target = $region40
      $region39: #{psage_forward.9} parent=35 // pred_region
        %259 = vst [vmem:[#allocation2] sm:$0xff] 0.0
        %260 = vst [vmem:[#allocation2 + $0x8] sm:$0xff] 0.0
        %261 = vst [vmem:[#allocation2 + $0x10] sm:$0xff] 0.0
        %262 = vst [vmem:[#allocation2 + $0x18] sm:$0xff] 0.0
        %263 = vst [vmem:[#allocation2 + $0x20] sm:$0xff] 0.0
        %264 = vst [vmem:[#allocation2 + $0x28] sm:$0xff] 0.0
        %265 = vst [vmem:[#allocation2 + $0x30] sm:$0xff] 0.0
        %266 = vst [vmem:[#allocation2 + $0x38] sm:$0xff] 0.0
        %267 = vst [vmem:[#allocation2 + $0x40] sm:$0xff] 0.0
        %268 = vst [vmem:[#allocation2 + $0x48] sm:$0xff] 0.0
        %269 = vst [vmem:[#allocation2 + $0x50] sm:$0xff] 0.0
        %270 = vst [vmem:[#allocation2 + $0x58] sm:$0xff] 0.0
        %271 = vst [vmem:[#allocation2 + $0x60] sm:$0xff] 0.0
        %272 = vst [vmem:[#allocation2 + $0x68] sm:$0xff] 0.0
        %273 = vst [vmem:[#allocation2 + $0x70] sm:$0xff] 0.0
        %274 = vst [vmem:[#allocation2 + $0x78] sm:$0xff] 0.0
      $region40: #{psage_forward.9} parent=35 // pred_fallthru
        _
      %s275 = smul.u32 %s20, 256
      %s276 = sshra.s32 %s275, 3
      %s277 = sand.u32 %s275, 7
      %s278 = smul.addr %s276, 4
      %s279 = scalar_lea.vmem %s1, %s278
      %v280 = vld [vmem:[%s279] sm:$0xf]
      %v281 = vld [vmem:[%s279 + $0x4] sm:$0xf]
      %v282 = vld [vmem:[%s279 + $0x8] sm:$0xf]
      %v283 = vld [vmem:[%s279 + $0xc] sm:$0xf]
      %v284 = vld [vmem:[%s279 + $0x10] sm:$0xf]
      %v285 = vld [vmem:[%s279 + $0x14] sm:$0xf]
      %v286 = vld [vmem:[%s279 + $0x18] sm:$0xf]
      %v287 = vld [vmem:[%s279 + $0x1c] sm:$0xf]
      %v288 = vld [vmem:[%s279 + $0x20] sm:$0xf]
      %v289 = vld [vmem:[%s279 + $0x24] sm:$0xf]
      %v290 = vld [vmem:[%s279 + $0x28] sm:$0xf]
      %v291 = vld [vmem:[%s279 + $0x2c] sm:$0xf]
      %v292 = vld [vmem:[%s279 + $0x30] sm:$0xf]
      %v293 = vld [vmem:[%s279 + $0x34] sm:$0xf]
      %v294 = vld [vmem:[%s279 + $0x38] sm:$0xf]
      %v295 = vld [vmem:[%s279 + $0x3c] sm:$0xf]
      %v296 = vld [vmem:[%s279 + $0x40] sm:$0xf]
      %v297 = vld [vmem:[%s279 + $0x44] sm:$0xf]
      %v298 = vld [vmem:[%s279 + $0x48] sm:$0xf]
      %v299 = vld [vmem:[%s279 + $0x4c] sm:$0xf]
      %v300 = vld [vmem:[%s279 + $0x50] sm:$0xf]
      %v301 = vld [vmem:[%s279 + $0x54] sm:$0xf]
      %v302 = vld [vmem:[%s279 + $0x58] sm:$0xf]
      %v303 = vld [vmem:[%s279 + $0x5c] sm:$0xf]
      %v304 = vld [vmem:[%s279 + $0x60] sm:$0xf]
      %v305 = vld [vmem:[%s279 + $0x64] sm:$0xf]
      %v306 = vld [vmem:[%s279 + $0x68] sm:$0xf]
      %v307 = vld [vmem:[%s279 + $0x6c] sm:$0xf]
      %v308 = vld [vmem:[%s279 + $0x70] sm:$0xf]
      %v309 = vld [vmem:[%s279 + $0x74] sm:$0xf]
      %v310 = vld [vmem:[%s279 + $0x78] sm:$0xf]
      %v311 = vld [vmem:[%s279 + $0x7c] sm:$0xf]
      %v312 = vld [vmem:[#allocation2] sm:$0xff]
      %v313 = vld [vmem:[#allocation2 + $0x8] sm:$0xff]
      %v314 = vld [vmem:[#allocation2 + $0x10] sm:$0xff]
      %v315 = vld [vmem:[#allocation2 + $0x18] sm:$0xff]
      %v316 = vld [vmem:[#allocation2 + $0x20] sm:$0xff]
      %v317 = vld [vmem:[#allocation2 + $0x28] sm:$0xff]
      %v318 = vld [vmem:[#allocation2 + $0x30] sm:$0xff]
      %v319 = vld [vmem:[#allocation2 + $0x38] sm:$0xff]
      %v320 = vld [vmem:[#allocation2 + $0x40] sm:$0xff]
      %v321 = vld [vmem:[#allocation2 + $0x48] sm:$0xff]
      %v322 = vld [vmem:[#allocation2 + $0x50] sm:$0xff]
      %v323 = vld [vmem:[#allocation2 + $0x58] sm:$0xff]
      %v324 = vld [vmem:[#allocation2 + $0x60] sm:$0xff]
      %v325 = vld [vmem:[#allocation2 + $0x68] sm:$0xff]
      %v326 = vld [vmem:[#allocation2 + $0x70] sm:$0xff]
      %v327 = vld [vmem:[#allocation2 + $0x78] sm:$0xff]
      %v328 = vld [vmem:[%s239] sm:$0xff]
      %v329 = vld [vmem:[%s239 + $0x8] sm:$0xff]
      %v330 = vld [vmem:[%s239 + $0x10] sm:$0xff]
      %v331 = vld [vmem:[%s239 + $0x18] sm:$0xff]
      %v332 = vld [vmem:[%s239 + $0x20] sm:$0xff]
      %v333 = vld [vmem:[%s239 + $0x28] sm:$0xff]
      %v334 = vld [vmem:[%s239 + $0x30] sm:$0xff]
      %v335 = vld [vmem:[%s239 + $0x38] sm:$0xff]
      %v336 = vld [vmem:[%s239 + $0x40] sm:$0xff]
      %v337 = vld [vmem:[%s239 + $0x48] sm:$0xff]
      %v338 = vld [vmem:[%s239 + $0x50] sm:$0xff]
      %v339 = vld [vmem:[%s239 + $0x58] sm:$0xff]
      %v340 = vld [vmem:[%s239 + $0x60] sm:$0xff]
      %v341 = vld [vmem:[%s239 + $0x68] sm:$0xff]
      %v342 = vld [vmem:[%s239 + $0x70] sm:$0xff]
      %v343 = vld [vmem:[%s239 + $0x78] sm:$0xff]
      %v360 = vunpack.c.l.b16 %v328
      %v361 = vunpack.c.h.b16 %v328
      %v362 = vunpack.c.l.b16 %v329
      %v363 = vunpack.c.h.b16 %v329
      %v364 = vunpack.c.l.b16 %v330
      %v365 = vunpack.c.h.b16 %v330
      %v366 = vunpack.c.l.b16 %v331
      %v367 = vunpack.c.h.b16 %v331
      %v368 = vunpack.c.l.b16 %v332
      %v369 = vunpack.c.h.b16 %v332
      %v370 = vunpack.c.l.b16 %v333
      %v371 = vunpack.c.h.b16 %v333
      %v372 = vunpack.c.l.b16 %v334
      %v373 = vunpack.c.h.b16 %v334
      %v374 = vunpack.c.l.b16 %v335
      %v375 = vunpack.c.h.b16 %v335
      %v376 = vunpack.c.l.b16 %v336
      %v377 = vunpack.c.h.b16 %v336
      %v378 = vunpack.c.l.b16 %v337
      %v379 = vunpack.c.h.b16 %v337
      %v380 = vunpack.c.l.b16 %v338
      %v381 = vunpack.c.h.b16 %v338
      %v382 = vunpack.c.l.b16 %v339
      %v383 = vunpack.c.h.b16 %v339
      %v384 = vunpack.c.l.b16 %v340
      %v385 = vunpack.c.h.b16 %v340
      %v386 = vunpack.c.l.b16 %v341
      %v387 = vunpack.c.h.b16 %v341
      %v388 = vunpack.c.l.b16 %v342
      %v389 = vunpack.c.h.b16 %v342
      %v390 = vunpack.c.l.b16 %v343
      %v391 = vunpack.c.h.b16 %v343
      %v392 = vpack.c.b16 %v362, %v360
      %v393 = vpack.c.b16 %v363, %v361
      %v394 = vpack.c.b16 %v366, %v364
      %v395 = vpack.c.b16 %v367, %v365
      %v396 = vpack.c.b16 %v370, %v368
      %v397 = vpack.c.b16 %v371, %v369
      %v398 = vpack.c.b16 %v374, %v372
      %v399 = vpack.c.b16 %v375, %v373
      %v400 = vpack.c.b16 %v378, %v376
      %v401 = vpack.c.b16 %v379, %v377
      %v402 = vpack.c.b16 %v382, %v380
      %v403 = vpack.c.b16 %v383, %v381
      %v404 = vpack.c.b16 %v386, %v384
      %v405 = vpack.c.b16 %v387, %v385
      %v406 = vpack.c.b16 %v390, %v388
      %v407 = vpack.c.b16 %v391, %v389
      %v456 = vunpack.c.l.b16 %v280
      %v457 = vunpack.c.l.b16 %v281
      %v458 = vunpack.c.l.b16 %v282
      %v459 = vunpack.c.l.b16 %v283
      %v460 = vunpack.c.l.b16 %v284
      %v461 = vunpack.c.l.b16 %v285
      %v462 = vunpack.c.l.b16 %v286
      %v463 = vunpack.c.l.b16 %v287
      %v464 = vunpack.c.l.b16 %v288
      %v465 = vunpack.c.l.b16 %v289
      %v466 = vunpack.c.l.b16 %v290
      %v467 = vunpack.c.l.b16 %v291
      %v468 = vunpack.c.l.b16 %v292
      %v469 = vunpack.c.l.b16 %v293
      %v470 = vunpack.c.l.b16 %v294
      %v471 = vunpack.c.l.b16 %v295
      %v472 = vunpack.c.l.b16 %v296
      %v473 = vunpack.c.l.b16 %v297
      %v474 = vunpack.c.l.b16 %v298
      %v475 = vunpack.c.l.b16 %v299
      %v476 = vunpack.c.l.b16 %v300
      %v477 = vunpack.c.l.b16 %v301
      %v478 = vunpack.c.l.b16 %v302
      %v479 = vunpack.c.l.b16 %v303
      %v480 = vunpack.c.l.b16 %v304
      %v481 = vunpack.c.l.b16 %v305
      %v482 = vunpack.c.l.b16 %v306
      %v483 = vunpack.c.l.b16 %v307
      %v484 = vunpack.c.l.b16 %v308
      %v485 = vunpack.c.l.b16 %v309
      %v486 = vunpack.c.l.b16 %v310
      %v487 = vunpack.c.l.b16 %v311
      %v488 = vpack.c.b16 %v457, %v456
      %v489 = vpack.c.b16 %v459, %v458
      %v490 = vpack.c.b16 %v461, %v460
      %v491 = vpack.c.b16 %v463, %v462
      %v492 = vpack.c.b16 %v465, %v464
      %v493 = vpack.c.b16 %v467, %v466
      %v494 = vpack.c.b16 %v469, %v468
      %v495 = vpack.c.b16 %v471, %v470
      %v496 = vpack.c.b16 %v473, %v472
      %v497 = vpack.c.b16 %v475, %v474
      %v498 = vpack.c.b16 %v477, %v476
      %v499 = vpack.c.b16 %v479, %v478
      %v500 = vpack.c.b16 %v481, %v480
      %v501 = vpack.c.b16 %v483, %v482
      %v502 = vpack.c.b16 %v485, %v484
      %v503 = vpack.c.b16 %v487, %v486
      %520 = vmatprep.subr.bf16.mxu0 0
      %521 = vmatpush1.bf16.msra.mxu0 %v495
      %522 = vmatprep.subr.bf16.mxu0 0
      %523 = vmatpush1.bf16.msra.mxu0 %v494
      %524 = vmatprep.subr.bf16.mxu0 0
      %525 = vmatpush1.bf16.msra.mxu0 %v493
      %526 = vmatprep.subr.bf16.mxu0 0
      %527 = vmatpush1.bf16.msra.mxu0 %v492
      %528 = vmatprep.subr.bf16.mxu0 0
      %529 = vmatpush1.bf16.msra.mxu0 %v491
      %530 = vmatprep.subr.bf16.mxu0 0
      %531 = vmatpush1.bf16.msra.mxu0 %v490
      %532 = vmatprep.subr.bf16.mxu0 0
      %533 = vmatpush1.bf16.msra.mxu0 %v489
      %534 = vmatprep.subr.bf16.mxu0 0
      %535 = vmatpush1.bf16.msra.mxu0 %v488
      %536 = vmatprep.subr.bf16.mxu0 0
      %537 = vmatpush2.bf16.msra.mxu0 %v503
      %538 = vmatprep.subr.bf16.mxu0 0
      %539 = vmatpush2.bf16.msra.mxu0 %v502
      %540 = vmatprep.subr.bf16.mxu0 0
      %541 = vmatpush2.bf16.msra.mxu0 %v501
      %542 = vmatprep.subr.bf16.mxu0 0
      %543 = vmatpush2.bf16.msra.mxu0 %v500
      %544 = vmatprep.subr.bf16.mxu0 0
      %545 = vmatpush2.bf16.msra.mxu0 %v499
      %546 = vmatprep.subr.bf16.mxu0 0
      %547 = vmatpush2.bf16.msra.mxu0 %v498
      %548 = vmatprep.subr.bf16.mxu0 0
      %549 = vmatpush2.bf16.msra.mxu0 %v497
      %550 = vmatprep.subr.bf16.mxu0 0
      %551 = vmatpush2.bf16.msra.mxu0 %v496
      %552 = vmatprep.mubr.bf16.mxu0 %v393
      %553 = vmatmul.mubr.bf16.gmra.mxu0 %v392
      %v554 = vpop.f32.mrf.mxu0
      %v555 = vadd.f32 0.0, %v554
      %v556 = vpop.f32.mrf.mxu0
      %v557 = vpop.f32.mrf.mxu0
      %v558 = vadd.f32 0.0, %v557
      %v559 = vpop.f32.mrf.mxu0
      %560 = vmatprep.mubr.bf16.mxu0 %v395
      %561 = vmatmul.mubr.bf16.gmra.mxu0 %v394
      %v562 = vpop.f32.mrf.mxu0
      %v563 = vadd.f32 0.0, %v562
      %v564 = vpop.f32.mrf.mxu0
      %v565 = vpop.f32.mrf.mxu0
      %v566 = vadd.f32 0.0, %v565
      %v567 = vpop.f32.mrf.mxu0
      %568 = vmatprep.mubr.bf16.mxu0 %v397
      %569 = vmatmul.mubr.bf16.gmra.mxu0 %v396
      %v570 = vpop.f32.mrf.mxu0
      %v571 = vadd.f32 0.0, %v570
      %v572 = vpop.f32.mrf.mxu0
      %v573 = vpop.f32.mrf.mxu0
      %v574 = vadd.f32 0.0, %v573
      %v575 = vpop.f32.mrf.mxu0
      %576 = vmatprep.mubr.bf16.mxu0 %v399
      %577 = vmatmul.mubr.bf16.gmra.mxu0 %v398
      %v578 = vpop.f32.mrf.mxu0
      %v579 = vadd.f32 0.0, %v578
      %v580 = vpop.f32.mrf.mxu0
      %v581 = vpop.f32.mrf.mxu0
      %v582 = vadd.f32 0.0, %v581
      %v583 = vpop.f32.mrf.mxu0
      %584 = vmatprep.mubr.bf16.mxu0 %v401
      %585 = vmatmul.mubr.bf16.gmra.mxu0 %v400
      %v586 = vpop.f32.mrf.mxu0
      %v587 = vadd.f32 0.0, %v586
      %v588 = vpop.f32.mrf.mxu0
      %v589 = vpop.f32.mrf.mxu0
      %v590 = vadd.f32 0.0, %v589
      %v591 = vpop.f32.mrf.mxu0
      %592 = vmatprep.mubr.bf16.mxu0 %v403
      %593 = vmatmul.mubr.bf16.gmra.mxu0 %v402
      %v594 = vpop.f32.mrf.mxu0
      %v595 = vadd.f32 0.0, %v594
      %v596 = vpop.f32.mrf.mxu0
      %v597 = vpop.f32.mrf.mxu0
      %v598 = vadd.f32 0.0, %v597
      %v599 = vpop.f32.mrf.mxu0
      %600 = vmatprep.mubr.bf16.mxu0 %v405
      %601 = vmatmul.mubr.bf16.gmra.mxu0 %v404
      %v602 = vpop.f32.mrf.mxu0
      %v603 = vadd.f32 0.0, %v602
      %v604 = vpop.f32.mrf.mxu0
      %v605 = vpop.f32.mrf.mxu0
      %v606 = vadd.f32 0.0, %v605
      %v607 = vpop.f32.mrf.mxu0
      %608 = vmatprep.mubr.bf16.mxu0 %v407
      %609 = vmatmul.mubr.bf16.gmra.mxu0 %v406
      %v610 = vpop.f32.mrf.mxu0
      %v611 = vadd.f32 0.0, %v610
      %v612 = vpop.f32.mrf.mxu0
      %v613 = vpop.f32.mrf.mxu0
      %v614 = vadd.f32 0.0, %v613
      %v615 = vpop.f32.mrf.mxu0
      %616 = vdwg.mxu0
      %v617 = vadd.f32 %v312, %v555
      %v618 = vadd.f32 %v313, %v558
      %v619 = vadd.f32 %v314, %v563
      %v620 = vadd.f32 %v315, %v566
      %v621 = vadd.f32 %v316, %v571
      %v622 = vadd.f32 %v317, %v574
      %v623 = vadd.f32 %v318, %v579
      %v624 = vadd.f32 %v319, %v582
      %v625 = vadd.f32 %v320, %v587
      %v626 = vadd.f32 %v321, %v590
      %v627 = vadd.f32 %v322, %v595
      %v628 = vadd.f32 %v323, %v598
      %v629 = vadd.f32 %v324, %v603
      %v630 = vadd.f32 %v325, %v606
      %v631 = vadd.f32 %v326, %v611
      %v632 = vadd.f32 %v327, %v614
      %633 = vst [vmem:[#allocation2] sm:$0xff] %v617
      %634 = vst [vmem:[#allocation2 + $0x8] sm:$0xff] %v618
      %635 = vst [vmem:[#allocation2 + $0x10] sm:$0xff] %v619
      %636 = vst [vmem:[#allocation2 + $0x18] sm:$0xff] %v620
      %637 = vst [vmem:[#allocation2 + $0x20] sm:$0xff] %v621
      %638 = vst [vmem:[#allocation2 + $0x28] sm:$0xff] %v622
      %639 = vst [vmem:[#allocation2 + $0x30] sm:$0xff] %v623
      %640 = vst [vmem:[#allocation2 + $0x38] sm:$0xff] %v624
      %641 = vst [vmem:[#allocation2 + $0x40] sm:$0xff] %v625
      %642 = vst [vmem:[#allocation2 + $0x48] sm:$0xff] %v626
      %643 = vst [vmem:[#allocation2 + $0x50] sm:$0xff] %v627
      %644 = vst [vmem:[#allocation2 + $0x58] sm:$0xff] %v628
      %645 = vst [vmem:[#allocation2 + $0x60] sm:$0xff] %v629
      %646 = vst [vmem:[#allocation2 + $0x68] sm:$0xff] %v630
      %647 = vst [vmem:[#allocation2 + $0x70] sm:$0xff] %v631
      %648 = vst [vmem:[#allocation2 + $0x78] sm:$0xff] %v632
      // Predicated region
      $region41: #{psage_forward.9} parent=35 // pred_check
        %p649 = pneg %p255
      $region42: #{psage_forward.9} parent=35 // pred_check_branch
        %651 = sbr.rel (%p649) target = $region44
      $region43: #{psage_forward.9} parent=35 // pred_region
        %v652 = vld [vmem:[#allocation2] sm:$0xff]
        %v653 = vld [vmem:[#allocation2 + $0x8] sm:$0xff]
        %v654 = vld [vmem:[#allocation2 + $0x10] sm:$0xff]
        %v655 = vld [vmem:[#allocation2 + $0x18] sm:$0xff]
        %v656 = vld [vmem:[#allocation2 + $0x20] sm:$0xff]
        %v657 = vld [vmem:[#allocation2 + $0x28] sm:$0xff]
        %v658 = vld [vmem:[#allocation2 + $0x30] sm:$0xff]
        %v659 = vld [vmem:[#allocation2 + $0x38] sm:$0xff]
        %v660 = vld [vmem:[#allocation2 + $0x40] sm:$0xff]
        %v661 = vld [vmem:[#allocation2 + $0x48] sm:$0xff]
        %v662 = vld [vmem:[#allocation2 + $0x50] sm:$0xff]
        %v663 = vld [vmem:[#allocation2 + $0x58] sm:$0xff]
        %v664 = vld [vmem:[#allocation2 + $0x60] sm:$0xff]
        %v665 = vld [vmem:[#allocation2 + $0x68] sm:$0xff]
        %v666 = vld [vmem:[#allocation2 + $0x70] sm:$0xff]
        %v667 = vld [vmem:[#allocation2 + $0x78] sm:$0xff]
        %v668 = vld [vmem:[%s246] sm:$0xff]
        %v669 = vld [vmem:[%s246 + $0x8] sm:$0xff]
        %v670 = vld [vmem:[%s246 + $0x10] sm:$0xff]
        %v671 = vld [vmem:[%s246 + $0x18] sm:$0xff]
        %v672 = vld [vmem:[%s246 + $0x20] sm:$0xff]
        %v673 = vld [vmem:[%s246 + $0x28] sm:$0xff]
        %v674 = vld [vmem:[%s246 + $0x30] sm:$0xff]
        %v675 = vld [vmem:[%s246 + $0x38] sm:$0xff]
        %v676 = vld [vmem:[%s246 + $0x40] sm:$0xff]
        %v677 = vld [vmem:[%s246 + $0x48] sm:$0xff]
        %v678 = vld [vmem:[%s246 + $0x50] sm:$0xff]
        %v679 = vld [vmem:[%s246 + $0x58] sm:$0xff]
        %v680 = vld [vmem:[%s246 + $0x60] sm:$0xff]
        %v681 = vld [vmem:[%s246 + $0x68] sm:$0xff]
        %v682 = vld [vmem:[%s246 + $0x70] sm:$0xff]
        %v683 = vld [vmem:[%s246 + $0x78] sm:$0xff]
        %685 = vset.pattern.permute.xlu0 0
        %686 = vperm.xlu0 %685, %v668
        %v687 = vpop.permute.xlu0 %686
        %690 = vset.pattern.permute.xlu0 0
        %691 = vperm.xlu0 %690, %v669
        %v692 = vpop.permute.xlu0 %691
        %695 = vset.pattern.permute.xlu0 0
        %696 = vperm.xlu0 %695, %v670
        %v697 = vpop.permute.xlu0 %696
        %700 = vset.pattern.permute.xlu0 0
        %701 = vperm.xlu0 %700, %v671
        %v702 = vpop.permute.xlu0 %701
        %705 = vset.pattern.permute.xlu0 0
        %706 = vperm.xlu0 %705, %v672
        %v707 = vpop.permute.xlu0 %706
        %710 = vset.pattern.permute.xlu0 0
        %711 = vperm.xlu0 %710, %v673
        %v712 = vpop.permute.xlu0 %711
        %715 = vset.pattern.permute.xlu0 0
        %716 = vperm.xlu0 %715, %v674
        %v717 = vpop.permute.xlu0 %716
        %720 = vset.pattern.permute.xlu0 0
        %721 = vperm.xlu0 %720, %v675
        %v722 = vpop.permute.xlu0 %721
        %725 = vset.pattern.permute.xlu0 0
        %726 = vperm.xlu0 %725, %v676
        %v727 = vpop.permute.xlu0 %726
        %730 = vset.pattern.permute.xlu0 0
        %731 = vperm.xlu0 %730, %v677
        %v732 = vpop.permute.xlu0 %731
        %735 = vset.pattern.permute.xlu0 0
        %736 = vperm.xlu0 %735, %v678
        %v737 = vpop.permute.xlu0 %736
        %740 = vset.pattern.permute.xlu0 0
        %741 = vperm.xlu0 %740, %v679
        %v742 = vpop.permute.xlu0 %741
        %745 = vset.pattern.permute.xlu0 0
        %746 = vperm.xlu0 %745, %v680
        %v747 = vpop.permute.xlu0 %746
        %750 = vset.pattern.permute.xlu0 0
        %751 = vperm.xlu0 %750, %v681
        %v752 = vpop.permute.xlu0 %751
        %755 = vset.pattern.permute.xlu0 0
        %756 = vperm.xlu0 %755, %v682
        %v757 = vpop.permute.xlu0 %756
        %760 = vset.pattern.permute.xlu0 0
        %761 = vperm.xlu0 %760, %v683
        %v762 = vpop.permute.xlu0 %761
        %v764 = vmul.f32 %v652, %v687
        %v765 = vmul.f32 %v653, %v692
        %v766 = vmul.f32 %v654, %v697
        %v767 = vmul.f32 %v655, %v702
        %v768 = vmul.f32 %v656, %v707
        %v769 = vmul.f32 %v657, %v712
        %v770 = vmul.f32 %v658, %v717
        %v771 = vmul.f32 %v659, %v722
        %v772 = vmul.f32 %v660, %v727
        %v773 = vmul.f32 %v661, %v732
        %v774 = vmul.f32 %v662, %v737
        %v775 = vmul.f32 %v663, %v742
        %v776 = vmul.f32 %v664, %v747
        %v777 = vmul.f32 %v665, %v752
        %v778 = vmul.f32 %v666, %v757
        %v779 = vmul.f32 %v667, %v762
        %v780 = vld [vmem:[%s3] sm:$0x1]
        %v782 = vlaneseq
        %v783 = vshrl.u32 %v782, 7
        %v784 = vsub.s32 0, %v783
        %v785 = vrot.slane %v780, %v784
        %v787 = vadd.f32 %v764, %v785
        %v788 = vadd.f32 %v765, %v785
        %v789 = vadd.f32 %v766, %v785
        %v790 = vadd.f32 %v767, %v785
        %v791 = vadd.f32 %v768, %v785
        %v792 = vadd.f32 %v769, %v785
        %v793 = vadd.f32 %v770, %v785
        %v794 = vadd.f32 %v771, %v785
        %v795 = vadd.f32 %v772, %v785
        %v796 = vadd.f32 %v773, %v785
        %v797 = vadd.f32 %v774, %v785
        %v798 = vadd.f32 %v775, %v785
        %v799 = vadd.f32 %v776, %v785
        %v800 = vadd.f32 %v777, %v785
        %v801 = vadd.f32 %v778, %v785
        %v802 = vadd.f32 %v779, %v785
        %v803 = vmax.f32 %v787, 0.0
        %v804 = vmax.f32 %v788, 0.0
        %v805 = vmax.f32 %v789, 0.0
        %v806 = vmax.f32 %v790, 0.0
        %v807 = vmax.f32 %v791, 0.0
        %v808 = vmax.f32 %v792, 0.0
        %v809 = vmax.f32 %v793, 0.0
        %v810 = vmax.f32 %v794, 0.0
        %v811 = vmax.f32 %v795, 0.0
        %v812 = vmax.f32 %v796, 0.0
        %v813 = vmax.f32 %v797, 0.0
        %v814 = vmax.f32 %v798, 0.0
        %v815 = vmax.f32 %v799, 0.0
        %v816 = vmax.f32 %v800, 0.0
        %v817 = vmax.f32 %v801, 0.0
        %v818 = vmax.f32 %v802, 0.0
        %v819 = vpack.c.bf16 %v804, %v803
        %v820 = vpack.c.bf16 %v806, %v805
        %v821 = vpack.c.bf16 %v808, %v807
        %v822 = vpack.c.bf16 %v810, %v809
        %v823 = vpack.c.bf16 %v812, %v811
        %v824 = vpack.c.bf16 %v814, %v813
        %v825 = vpack.c.bf16 %v816, %v815
        %v826 = vpack.c.bf16 %v818, %v817
        %v835 = vunpack.c.l.b16 %v819
        %v836 = vunpack.c.h.b16 %v819
        %v837 = vunpack.c.l.b16 %v820
        %v838 = vunpack.c.h.b16 %v820
        %v839 = vunpack.c.l.b16 %v821
        %v840 = vunpack.c.h.b16 %v821
        %v841 = vunpack.c.l.b16 %v822
        %v842 = vunpack.c.h.b16 %v822
        %v843 = vunpack.c.l.b16 %v823
        %v844 = vunpack.c.h.b16 %v823
        %v845 = vunpack.c.l.b16 %v824
        %v846 = vunpack.c.h.b16 %v824
        %v847 = vunpack.c.l.b16 %v825
        %v848 = vunpack.c.h.b16 %v825
        %v849 = vunpack.c.l.b16 %v826
        %v850 = vunpack.c.h.b16 %v826
        %v851 = vpack.c.b16 %v835, %v835
        %v852 = vpack.c.b16 %v836, %v836
        %v853 = vpack.c.b16 %v837, %v837
        %v854 = vpack.c.b16 %v838, %v838
        %v855 = vpack.c.b16 %v839, %v839
        %v856 = vpack.c.b16 %v840, %v840
        %v857 = vpack.c.b16 %v841, %v841
        %v858 = vpack.c.b16 %v842, %v842
        %v859 = vpack.c.b16 %v843, %v843
        %v860 = vpack.c.b16 %v844, %v844
        %v861 = vpack.c.b16 %v845, %v845
        %v862 = vpack.c.b16 %v846, %v846
        %v863 = vpack.c.b16 %v847, %v847
        %v864 = vpack.c.b16 %v848, %v848
        %v865 = vpack.c.b16 %v849, %v849
        %v866 = vpack.c.b16 %v850, %v850
        %883 = vst [vmem:[%s252] sm:$0xf] %v851
        %884 = vst [vmem:[%s252 + $0x4] sm:$0xf] %v852
        %885 = vst [vmem:[%s252 + $0x8] sm:$0xf] %v853
        %886 = vst [vmem:[%s252 + $0xc] sm:$0xf] %v854
        %887 = vst [vmem:[%s252 + $0x10] sm:$0xf] %v855
        %888 = vst [vmem:[%s252 + $0x14] sm:$0xf] %v856
        %889 = vst [vmem:[%s252 + $0x18] sm:$0xf] %v857
        %890 = vst [vmem:[%s252 + $0x1c] sm:$0xf] %v858
        %891 = vst [vmem:[%s252 + $0x20] sm:$0xf] %v859
        %892 = vst [vmem:[%s252 + $0x24] sm:$0xf] %v860
        %893 = vst [vmem:[%s252 + $0x28] sm:$0xf] %v861
        %894 = vst [vmem:[%s252 + $0x2c] sm:$0xf] %v862
        %895 = vst [vmem:[%s252 + $0x30] sm:$0xf] %v863
        %896 = vst [vmem:[%s252 + $0x34] sm:$0xf] %v864
        %897 = vst [vmem:[%s252 + $0x38] sm:$0xf] %v865
        %898 = vst [vmem:[%s252 + $0x3c] sm:$0xf] %v866
      $region44: #{psage_forward.9} parent=35 // pred_fallthru
        _
      %s899 = smul.u32 16, %s19
      %p900 = scmp.lt.s32.totalorder %s899, 31
      %s901 = scalar_select %p900, %s899, 31
      %s902 = smul.addr %s901, 4
      %s903 = scalar_lea.vmem %s4, %s902
      // Predicated region
      $region45: #{psage_forward.9} parent=35 // pred_check
        %p904 = pneg %p141
      $region46: #{psage_forward.9} parent=35 // pred_check_branch
        %906 = sbr.rel (%p904) target = $region48
      $region47: #{psage_forward.9} parent=35 // pred_region
        %s907 = smul.u32 16, %s19
      $region48: #{psage_forward.9} parent=35 // pred_fallthru
        _
    $region36: #{psage_forward.9} parent=5 // pred_fallthru
      _
    %p908 = scmp.le.s32.totalorder 2, %s10
    // Predicated region
    $region49: #{psage_forward.9} parent=5 // pred_check
      %p909 = pneg %p908
    $region50: #{psage_forward.9} parent=5 // pred_check_branch
      %911 = sbr.rel (%p909) target = $region52
    $region51: #{psage_forward.9} parent=5 // pred_region
      %s912 = ssub.s32 %s10, 2
      // Predicated region
      $region53: #{psage_forward.9} parent=51 // pred_check
        %p913 = pneg %p147
      $region54: #{psage_forward.9} parent=51 // pred_check_branch
        %915 = sbr.rel (%p913) target = $region56
      $region55: #{psage_forward.9} parent=51 // pred_region
        %s916 = smul.u32 16, %s21
        %p917 = scmp.lt.s32.totalorder %s916, 31
        %s918 = scalar_select %p917, %s916, 31
        %s919 = smul.addr %s918, 4
        %s920 = scalar_lea.vmem %s4, %s919
      $region56: #{psage_forward.9} parent=51 // pred_fallthru
        _
    $region52: #{psage_forward.9} parent=5 // pred_fallthru
      _
  $region6: #{psage_forward.9} parent=0 // loop_footer
    %s14 = sadd.s32 1, %s10
  $region7: #{psage_forward.9} parent=0 // loop_footer_branch
    %9 = sbr.rel target = $region3
  $region8: #{psage_forward.9} parent=0 // loop_exit
    _

</llo_original>
